<compile_context>
chip_gen: v7x
topology: tpu7x:2x2x1
jax: 0.10.0
libtpu: 0.0.40
codegen_flags: <defaults>
</compile_context>

<pallas_src>
import jax
import jax.numpy as jnp
from jax import lax
from jax.experimental import pallas as pl
from jax.experimental.pallas import tpu as pltpu

# ----------------------------- architecture constants -----------------------------
IN_CHANNELS = 1
IN_DIMS = (16, 16)
LATENT_DIM = 8
FC_ARCH = [32, 32]
FC_PAD = 128                                                            # lane-padded fc width
CONV_OUT_DIMS = (4, 4)                                                  # decoder input spatial
CONV_OUT_CHANNELS = 16                                                  # decoder input channels
FC_OUT = CONV_OUT_DIMS[0] * CONV_OUT_DIMS[1] * CONV_OUT_CHANNELS        # 256
STAGE1_DIMS = (8, 8)                                                    # after Upsample #1
STAGE1_CHANNELS = 8                                                     # ConvT(16->8) out channels
STAGE1_OUT = STAGE1_CHANNELS * STAGE1_DIMS[0] * STAGE1_DIMS[1]          # 512
OUT_PIX = IN_CHANNELS * IN_DIMS[0] * IN_DIMS[1]                         # 256 (per mu / per logvar)


# --------------------------------- Pallas kernel ------------------------------------
def decoder_kernel(x_ref, w0_ref, b0_ref, w1_ref, b1_ref, w2_ref, b2_ref,
                   m1_ref, c1_ref, m2mu_ref, c2mu_ref, m2lv_ref, c2lv_ref,
                   mu_ref, var_ref):
    """Full DecodingCNN forward for a (TB, latent) batch tile, entirely VMEM-resident.

    Activations are (TB, features) with the feature axis on lanes.  The two deconv
    stages are pre-folded dense operators (bf16), so each is one lane-dense MXU matmul
    with f32 accumulation.
    """
    f32 = jnp.float32
    bf16 = jnp.bfloat16

    # --- fc stack: (Linear + ReLU) x 3, lane-padded to 128 (zero rows/cols are exact) ---
    h = jnp.dot(x_ref[...], w0_ref[...], preferred_element_type=f32) + b0_ref[...]
    h = jnp.maximum(h, 0.0)
    h = jnp.dot(h, w1_ref[...], preferred_element_type=f32) + b1_ref[...]
    h = jnp.maximum(h, 0.0)
    h = jnp.dot(h, w2_ref[...], preferred_element_type=f32) + b2_ref[...]
    h = jnp.maximum(h, 0.0)                       # (TB, 256) == flat NCHW (16, 4, 4)

    # --- stage 1: Upsample(8,8) + ConvT(16->8,k3,s1,p1) + ReLU folded into one bf16 matmul ---
    h = jnp.dot(h.astype(bf16), m1_ref[...], preferred_element_type=f32) + c1_ref[...]
    h = jnp.maximum(h, 0.0)                       # (TB, 512) == flat NCHW (8, 8, 8)
    hb = h.astype(bf16)

    # --- stage 2 (heads): Upsample(16,16) + ConvT(8->2,k3,s1,p1), split into mu / logvar ---
    mu_ref[...] = jnp.dot(hb, m2mu_ref[...], preferred_element_type=f32) + c2mu_ref[...]
    var_ref[...] = jnp.exp(
        jnp.dot(hb, m2lv_ref[...], preferred_element_type=f32) + c2lv_ref[...])


# ----------------------------------- forward ----------------------------------------
def decoding_cnn_forward(x, packed, *, batch_tile=128):
    """x: (..., latent_dim) -> (mu, var), each (..., in_channels, *in_dims)."""
    batch_shape = x.shape[:-1]
    xf = x.reshape(-1, x.shape[-1]).astype(jnp.float32)
    B = xf.shape[0]

    # Batch tile: at small B just round up to the 8-row sublane tile; at large B use
    # batch_tile-sized tiles so the weight DMA is amortized and tiles pipeline.
    tb = batch_tile if B >= batch_tile else 8 * pl.cdiv(B, 8)
    n_tiles = pl.cdiv(B, tb)
    Bp = n_tiles * tb
    if Bp != B:
        xf = jnp.pad(xf, ((0, Bp - B), (0, 0)))

    row_map = lambda i: (i, 0)        # activation / output tiles march down the batch
    const_map = lambda i: (0, 0)      # weights / biases stay VMEM-resident across tiles

    # Advisory cost so XLA overlaps the custom call with surrounding ops.
    flops = 2 * Bp * (LATENT_DIM * FC_PAD + FC_PAD * FC_PAD + FC_PAD * FC_OUT
                      + FC_OUT * STAGE1_OUT + STAGE1_OUT * 2 * OUT_PIX)
    weight_bytes = ((LATENT_DIM * FC_PAD + FC_PAD * FC_PAD + FC_PAD * FC_OUT
                     + 2 * FC_PAD + FC_OUT) * 4
                    + (FC_OUT * STAGE1_OUT + 2 * STAGE1_OUT * OUT_PIX) * 2
                    + (STAGE1_OUT + 2 * OUT_PIX) * 4)
    cost = pl.CostEstimate(flops=flops,
                           transcendentals=Bp * OUT_PIX,
                           bytes_accessed=weight_bytes + Bp * (LATENT_DIM + 2 * OUT_PIX) * 4)

    mu, var = pl.pallas_call(
        decoder_kernel,
        out_shape=(jax.ShapeDtypeStruct((Bp, OUT_PIX), jnp.float32),
                   jax.ShapeDtypeStruct((Bp, OUT_PIX), jnp.float32)),
        grid_spec=pltpu.PrefetchScalarGridSpec(
            num_scalar_prefetch=0,
            grid=(n_tiles,),
            in_specs=[
                pl.BlockSpec((tb, LATENT_DIM), row_map),
                pl.BlockSpec((LATENT_DIM, FC_PAD), const_map),
                pl.BlockSpec((1, FC_PAD), const_map),
                pl.BlockSpec((FC_PAD, FC_PAD), const_map),
                pl.BlockSpec((1, FC_PAD), const_map),
                pl.BlockSpec((FC_PAD, FC_OUT), const_map),
                pl.BlockSpec((1, FC_OUT), const_map),
                pl.BlockSpec((FC_OUT, STAGE1_OUT), const_map),
                pl.BlockSpec((1, STAGE1_OUT), const_map),
                pl.BlockSpec((STAGE1_OUT, OUT_PIX), const_map),
                pl.BlockSpec((1, OUT_PIX), const_map),
                pl.BlockSpec((STAGE1_OUT, OUT_PIX), const_map),
                pl.BlockSpec((1, OUT_PIX), const_map),
            ],
            out_specs=(pl.BlockSpec((tb, OUT_PIX), row_map),
                       pl.BlockSpec((tb, OUT_PIX), row_map)),
        ),
        compiler_params=pltpu.CompilerParams(dimension_semantics=("parallel",)),
        cost_estimate=cost,
    )(xf, packed["w0"], packed["b0"], packed["w1"], packed["b1"],
      packed["w2"], packed["b2"], packed["m1"], packed["c1"],
      packed["m2mu"], packed["c2mu"], packed["m2lv"], packed["c2lv"])

    # (B, C*H*W) is already channel-major / row-major -> reshape is metadata-only.
    mu = mu[:B].reshape(*batch_shape, IN_CHANNELS, *IN_DIMS)
    var = var[:B].reshape(*batch_shape, IN_CHANNELS, *IN_DIMS)
    return mu, var


# ----------------------- parameter construction & packing ---------------------------
def _upsample_nearest(x_nhwc, out_hw):
    """nn.Upsample(size=out_hw, mode='nearest') for exact integer scale factors."""
    _, H, W, _ = x_nhwc.shape
    fy, fx = out_hw[0] // H, out_hw[1] // W
    return jnp.repeat(jnp.repeat(x_nhwc, fy, axis=1), fx, axis=2)


def _convt_to_conv_hwio(wt):
    """PyTorch ConvTranspose2d weight (Cin,Cout,kH,kW), stride=1 pad=1 (output_padding=0)
    == SAME conv with the spatially flipped kernel; return HWIO (kH,kW,Cin,Cout)."""
    return jnp.transpose(wt[:, :, ::-1, ::-1], (2, 3, 0, 1))


def _deconv_stage_operator(w_hwio, cin, in_hw, out_hw):
    """Dense (cin*in_hw, cout*out_hw) matrix of the linear map
         flat-NCHW -> nearest-Upsample(out_hw) -> 3x3 SAME conv(w_hwio) -> flat-NCHW,
    built once at parameter-packing time by pushing the identity basis through the
    exact reference ops."""
    n_in = cin * in_hw[0] * in_hw[1]
    basis = jnp.eye(n_in, dtype=jnp.float32).reshape(n_in, cin, *in_hw)     # NCHW basis
    basis = jnp.transpose(basis, (0, 2, 3, 1))                              # NHWC
    basis = _upsample_nearest(basis, out_hw)
    out = lax.conv_general_dilated(
        basis, w_hwio, (1, 1), "SAME",
        dimension_numbers=("NHWC", "HWIO", "NHWC"),
        precision=lax.Precision.HIGHEST)
    cout = w_hwio.shape[-1]
    return jnp.transpose(out, (0, 3, 1, 2)).reshape(n_in, cout * out_hw[0] * out_hw[1])


def _pad2(a, shape):
    out = jnp.zeros(shape, jnp.float32)
    return out.at[:a.shape[0], :a.shape[1]].set(a)


def pack_params(params):
    """One-time conversion of module parameters into lane-dense kernel operands.

    fc weights are zero-padded to 128 lanes (exact); the two folded deconv operators
    are stored in bf16 (weight-DMA is the bottleneck); the stage-2 operator is split
    into independent mu / logvar heads."""
    w0 = _pad2(params["w0"], (LATENT_DIM, FC_PAD))
    b0 = _pad2(params["b0"], (1, FC_PAD))
    w1 = _pad2(params["w1"], (FC_PAD, FC_PAD))
    b1 = _pad2(params["b1"], (1, FC_PAD))
    w2 = _pad2(params["w2"], (FC_PAD, FC_OUT))
    b2 = params["b2"]

    m1 = _deconv_stage_operator(params["wd1"], CONV_OUT_CHANNELS, CONV_OUT_DIMS, STAGE1_DIMS)
    m2 = _deconv_stage_operator(params["wd2"], STAGE1_CHANNELS, STAGE1_DIMS, IN_DIMS)
    c1 = jnp.repeat(params["bd1"].reshape(-1), STAGE1_DIMS[0] * STAGE1_DIMS[1])[None, :]
    c2 = jnp.repeat(params["bd2"].reshape(-1), IN_DIMS[0] * IN_DIMS[1])[None, :]

    return dict(w0=w0, b0=b0, w1=w1, b1=b1, w2=w2, b2=b2,
                m1=m1.astype(jnp.bfloat16), c1=c1,
                m2mu=m2[:, :OUT_PIX].astype(jnp.bfloat16), c2mu=c2[:, :OUT_PIX],
                m2lv=m2[:, OUT_PIX:].astype(jnp.bfloat16), c2lv=c2[:, OUT_PIX:])


def init_params(key):
    ks = jax.random.split(key, 10)
    s = 0.1
    w0 = s * jax.random.normal(ks[0], (LATENT_DIM, FC_ARCH[0]), jnp.float32)
    b0 = s * jax.random.normal(ks[1], (1, FC_ARCH[0]), jnp.float32)
    w1 = s * jax.random.normal(ks[2], (FC_ARCH[0], FC_ARCH[1]), jnp.float32)
    b1 = s * jax.random.normal(ks[3], (1, FC_ARCH[1]), jnp.float32)
    w2 = s * jax.random.normal(ks[4], (FC_ARCH[1], FC_OUT), jnp.float32)
    b2 = s * jax.random.normal(ks[5], (1, FC_OUT), jnp.float32)
    # ConvTranspose2d weights in PyTorch layout (Cin, Cout, kH, kW), converted to HWIO.
    wt1 = s * jax.random.normal(ks[6], (CONV_OUT_CHANNELS, STAGE1_CHANNELS, 3, 3), jnp.float32)
    bd1 = s * jax.random.normal(ks[7], (1, STAGE1_CHANNELS), jnp.float32)
    wt2 = s * jax.random.normal(ks[8], (STAGE1_CHANNELS, 2 * IN_CHANNELS, 3, 3), jnp.float32)
    bd2 = s * jax.random.normal(ks[9], (1, 2 * IN_CHANNELS), jnp.float32)
    return dict(w0=w0, b0=b0, w1=w1, b1=b1, w2=w2, b2=b2,
                wd1=_convt_to_conv_hwio(wt1), bd1=bd1,
                wd2=_convt_to_conv_hwio(wt2), bd2=bd2)


# ------------------------------- pure-JAX reference ---------------------------------
def reference_forward(x, params):
    hp = lax.Precision.HIGHEST
    batch_shape = x.shape[:-1]
    xf = x.reshape(-1, x.shape[-1]).astype(jnp.float32)
    B = xf.shape[0]
    h = jnp.maximum(jnp.dot(xf, params["w0"], precision=hp) + params["b0"], 0.0)
    h = jnp.maximum(jnp.dot(h, params["w1"], precision=hp) + params["b1"], 0.0)
    h = jnp.maximum(jnp.dot(h, params["w2"], precision=hp) + params["b2"], 0.0)
    h = jnp.transpose(h.reshape(B, CONV_OUT_CHANNELS, *CONV_OUT_DIMS), (0, 2, 3, 1))
    h = _upsample_nearest(h, STAGE1_DIMS)
    h = lax.conv_general_dilated(h, params["wd1"], (1, 1), "SAME",
                                 dimension_numbers=("NHWC", "HWIO", "NHWC"), precision=hp)
    h = jnp.maximum(h + params["bd1"].reshape(1, 1, 1, -1), 0.0)
    h = _upsample_nearest(h, IN_DIMS)
    h = lax.conv_general_dilated(h, params["wd2"], (1, 1), "SAME",
                                 dimension_numbers=("NHWC", "HWIO", "NHWC"), precision=hp)
    h = h + params["bd2"].reshape(1, 1, 1, -1)
    h = jnp.transpose(h, (0, 3, 1, 2)).reshape(*batch_shape, 2 * IN_CHANNELS, *IN_DIMS)
    mu, logvar = jnp.split(h, 2, axis=-3)
    return mu, jnp.exp(logvar)


# -------------------------------------- main -----------------------------------------
if __name__ == "__main__":
    key = jax.random.PRNGKey(0)
    kp, kx = jax.random.split(key)
    params = init_params(kp)
    packed = pack_params(params)        # one-time operator folding + bf16 cast (off hot path)

    # leading batch dims (2, 3) exercise the "... latent_dim" flattening in forward()
    x = jax.random.normal(kx, (2, 3, LATENT_DIM), jnp.float32)

    mu, var = jax.jit(decoding_cnn_forward)(x, packed)
    jax.block_until_ready((mu, var))

    assert mu.shape == (2, 3, IN_CHANNELS, *IN_DIMS)
    assert var.shape == (2, 3, IN_CHANNELS, *IN_DIMS)

    # Tolerance relaxed vs. the pure-f32 version because the folded deconv operators
    # (and their activations) are bf16 in the kernel; accumulation is still f32.
    mu_ref, var_ref = reference_forward(x, params)
    assert jnp.allclose(mu, mu_ref, atol=2e-2, rtol=2e-2)
    assert jnp.allclose(var, var_ref, atol=2e-2, rtol=2e-2)

    print("KERNEL_OK")
</pallas_src>

<mosaic_0001>
module attributes {stable_mosaic.version = 11 : i64} {
  func.func @decoder_kernel(%arg0: i32, %arg1: memref<8x8xf32, #tpu.memory_space<vmem>>, %arg2: memref<8x128xf32, #tpu.memory_space<vmem>>, %arg3: memref<1x128xf32, #tpu.memory_space<vmem>>, %arg4: memref<128x128xf32, #tpu.memory_space<vmem>>, %arg5: memref<1x128xf32, #tpu.memory_space<vmem>>, %arg6: memref<128x256xf32, #tpu.memory_space<vmem>>, %arg7: memref<1x256xf32, #tpu.memory_space<vmem>>, %arg8: memref<256x512xbf16, #tpu.memory_space<vmem>>, %arg9: memref<1x512xf32, #tpu.memory_space<vmem>>, %arg10: memref<512x256xbf16, #tpu.memory_space<vmem>>, %arg11: memref<1x256xf32, #tpu.memory_space<vmem>>, %arg12: memref<512x256xbf16, #tpu.memory_space<vmem>>, %arg13: memref<1x256xf32, #tpu.memory_space<vmem>>, %arg14: memref<8x256xf32, #tpu.memory_space<vmem>>, %arg15: memref<8x256xf32, #tpu.memory_space<vmem>>) attributes {dimension_semantics = [#tpu.dimension_semantics<parallel>], iteration_bounds = array<i64: 1>, scalar_prefetch = 0 : i64, scratch_operands = 0 : i64, tpu.core_type = #tpu.core_type<tc>, window_params = [{transform_indices = @transform_0, window_bounds = array<i64: 8, 8>}, {pipeline_mode = #tpu.pipeline_mode<synchronous>, transform_indices = @transform_1, window_bounds = array<i64: 8, 128>}, {pipeline_mode = #tpu.pipeline_mode<synchronous>, transform_indices = @transform_2, window_bounds = array<i64: 1, 128>}, {pipeline_mode = #tpu.pipeline_mode<synchronous>, transform_indices = @transform_3, window_bounds = array<i64: 128, 128>}, {pipeline_mode = #tpu.pipeline_mode<synchronous>, transform_indices = @transform_4, window_bounds = array<i64: 1, 128>}, {pipeline_mode = #tpu.pipeline_mode<synchronous>, transform_indices = @transform_5, window_bounds = array<i64: 128, 256>}, {pipeline_mode = #tpu.pipeline_mode<synchronous>, transform_indices = @transform_6, window_bounds = array<i64: 1, 256>}, {pipeline_mode = #tpu.pipeline_mode<synchronous>, transform_indices = @transform_7, window_bounds = array<i64: 256, 512>}, {pipeline_mode = #tpu.pipeline_mode<synchronous>, transform_indices = @transform_8, window_bounds = array<i64: 1, 512>}, {pipeline_mode = #tpu.pipeline_mode<synchronous>, transform_indices = @transform_9, window_bounds = array<i64: 512, 256>}, {pipeline_mode = #tpu.pipeline_mode<synchronous>, transform_indices = @transform_10, window_bounds = array<i64: 1, 256>}, {pipeline_mode = #tpu.pipeline_mode<synchronous>, transform_indices = @transform_11, window_bounds = array<i64: 512, 256>}, {pipeline_mode = #tpu.pipeline_mode<synchronous>, transform_indices = @transform_12, window_bounds = array<i64: 1, 256>}, {transform_indices = @transform_13, window_bounds = array<i64: 8, 256>}, {transform_indices = @transform_14, window_bounds = array<i64: 8, 256>}]} {
    %c0 = arith.constant 0 : index
    %c0_0 = arith.constant 0 : index
    %0 = vector.load %arg1[%c0, %c0_0] : memref<8x8xf32, #tpu.memory_space<vmem>>, vector<8x8xf32>
    %c0_1 = arith.constant 0 : index
    %c0_2 = arith.constant 0 : index
    %1 = vector.load %arg2[%c0_1, %c0_2] : memref<8x128xf32, #tpu.memory_space<vmem>>, vector<8x128xf32>
    %cst = arith.constant dense<0.000000e+00> : vector<8x128xf32>
    %2 = tpu.matmul %0, %1, %cst {dimension_numbers = #tpu.dot_dimension_numbers<[1], [0], [0], [1], [0, 0, 1, 1], [], []>} : vector<8x8xf32>, vector<8x128xf32>, vector<8x128xf32> -> vector<8x128xf32>
    %c0_3 = arith.constant 0 : index
    %c0_4 = arith.constant 0 : index
    %3 = vector.load %arg3[%c0_3, %c0_4] : memref<1x128xf32, #tpu.memory_space<vmem>>, vector<1x128xf32>
    %4 = vector.broadcast %3 : vector<1x128xf32> to vector<8x128xf32>
    %5 = arith.addf %2, %4 : vector<8x128xf32>
    %cst_5 = arith.constant 0.000000e+00 : f32
    %6 = vector.broadcast %cst_5 : f32 to vector<8x128xf32>
    %7 = arith.maximumf %5, %6 : vector<8x128xf32>
    %c0_6 = arith.constant 0 : index
    %c0_7 = arith.constant 0 : index
    %8 = vector.load %arg4[%c0_6, %c0_7] : memref<128x128xf32, #tpu.memory_space<vmem>>, vector<128x128xf32>
    %cst_8 = arith.constant dense<0.000000e+00> : vector<8x128xf32>
    %9 = tpu.matmul %7, %8, %cst_8 {dimension_numbers = #tpu.dot_dimension_numbers<[1], [0], [0], [1], [0, 0, 1, 1], [], []>} : vector<8x128xf32>, vector<128x128xf32>, vector<8x128xf32> -> vector<8x128xf32>
    %c0_9 = arith.constant 0 : index
    %c0_10 = arith.constant 0 : index
    %10 = vector.load %arg5[%c0_9, %c0_10] : memref<1x128xf32, #tpu.memory_space<vmem>>, vector<1x128xf32>
    %11 = vector.broadcast %10 : vector<1x128xf32> to vector<8x128xf32>
    %12 = arith.addf %9, %11 : vector<8x128xf32>
    %cst_11 = arith.constant 0.000000e+00 : f32
    %13 = vector.broadcast %cst_11 : f32 to vector<8x128xf32>
    %14 = arith.maximumf %12, %13 : vector<8x128xf32>
    %c0_12 = arith.constant 0 : index
    %c0_13 = arith.constant 0 : index
    %15 = vector.load %arg6[%c0_12, %c0_13] : memref<128x256xf32, #tpu.memory_space<vmem>>, vector<128x256xf32>
    %cst_14 = arith.constant dense<0.000000e+00> : vector<8x256xf32>
    %16 = tpu.matmul %14, %15, %cst_14 {dimension_numbers = #tpu.dot_dimension_numbers<[1], [0], [0], [1], [0, 0, 1, 1], [], []>} : vector<8x128xf32>, vector<128x256xf32>, vector<8x256xf32> -> vector<8x256xf32>
    %c0_15 = arith.constant 0 : index
    %c0_16 = arith.constant 0 : index
    %17 = vector.load %arg7[%c0_15, %c0_16] : memref<1x256xf32, #tpu.memory_space<vmem>>, vector<1x256xf32>
    %18 = vector.broadcast %17 : vector<1x256xf32> to vector<8x256xf32>
    %19 = arith.addf %16, %18 : vector<8x256xf32>
    %cst_17 = arith.constant 0.000000e+00 : f32
    %20 = vector.broadcast %cst_17 : f32 to vector<8x256xf32>
    %21 = arith.maximumf %19, %20 : vector<8x256xf32>
    %22 = arith.truncf %21 : vector<8x256xf32> to vector<8x256xbf16>
    %c0_18 = arith.constant 0 : index
    %c0_19 = arith.constant 0 : index
    %23 = vector.load %arg8[%c0_18, %c0_19] : memref<256x512xbf16, #tpu.memory_space<vmem>>, vector<256x512xbf16>
    %cst_20 = arith.constant dense<0.000000e+00> : vector<8x512xf32>
    %24 = tpu.matmul %22, %23, %cst_20 {dimension_numbers = #tpu.dot_dimension_numbers<[1], [0], [0], [1], [0, 0, 1, 1], [], []>} : vector<8x256xbf16>, vector<256x512xbf16>, vector<8x512xf32> -> vector<8x512xf32>
    %c0_21 = arith.constant 0 : index
    %c0_22 = arith.constant 0 : index
    %25 = vector.load %arg9[%c0_21, %c0_22] : memref<1x512xf32, #tpu.memory_space<vmem>>, vector<1x512xf32>
    %26 = vector.broadcast %25 : vector<1x512xf32> to vector<8x512xf32>
    %27 = arith.addf %24, %26 : vector<8x512xf32>
    %cst_23 = arith.constant 0.000000e+00 : f32
    %28 = vector.broadcast %cst_23 : f32 to vector<8x512xf32>
    %29 = arith.maximumf %27, %28 : vector<8x512xf32>
    %30 = arith.truncf %29 : vector<8x512xf32> to vector<8x512xbf16>
    %c0_24 = arith.constant 0 : index
    %c0_25 = arith.constant 0 : index
    %31 = vector.load %arg10[%c0_24, %c0_25] : memref<512x256xbf16, #tpu.memory_space<vmem>>, vector<512x256xbf16>
    %cst_26 = arith.constant dense<0.000000e+00> : vector<8x256xf32>
    %32 = tpu.matmul %30, %31, %cst_26 {dimension_numbers = #tpu.dot_dimension_numbers<[1], [0], [0], [1], [0, 0, 1, 1], [], []>} : vector<8x512xbf16>, vector<512x256xbf16>, vector<8x256xf32> -> vector<8x256xf32>
    %c0_27 = arith.constant 0 : index
    %c0_28 = arith.constant 0 : index
    %33 = vector.load %arg11[%c0_27, %c0_28] : memref<1x256xf32, #tpu.memory_space<vmem>>, vector<1x256xf32>
    %34 = vector.broadcast %33 : vector<1x256xf32> to vector<8x256xf32>
    %35 = arith.addf %32, %34 : vector<8x256xf32>
    %c0_29 = arith.constant 0 : index
    %c0_30 = arith.constant 0 : index
    %36 = vector.load %arg14[%c0_29, %c0_30] : memref<8x256xf32, #tpu.memory_space<vmem>>, vector<8x256xf32>
    tpu.vector_store %arg14[%c0_29, %c0_30], %35 {strides = array<i32>} : memref<8x256xf32, #tpu.memory_space<vmem>>, vector<8x256xf32>,
    %c0_31 = arith.constant 0 : index
    %c0_32 = arith.constant 0 : index
    %37 = vector.load %arg12[%c0_31, %c0_32] : memref<512x256xbf16, #tpu.memory_space<vmem>>, vector<512x256xbf16>
    %cst_33 = arith.constant dense<0.000000e+00> : vector<8x256xf32>
    %38 = tpu.matmul %30, %37, %cst_33 {dimension_numbers = #tpu.dot_dimension_numbers<[1], [0], [0], [1], [0, 0, 1, 1], [], []>} : vector<8x512xbf16>, vector<512x256xbf16>, vector<8x256xf32> -> vector<8x256xf32>
    %c0_34 = arith.constant 0 : index
    %c0_35 = arith.constant 0 : index
    %39 = vector.load %arg13[%c0_34, %c0_35] : memref<1x256xf32, #tpu.memory_space<vmem>>, vector<1x256xf32>
    %40 = vector.broadcast %39 : vector<1x256xf32> to vector<8x256xf32>
    %41 = arith.addf %38, %40 : vector<8x256xf32>
    %42 = math.exp %41 : vector<8x256xf32>
    %c0_36 = arith.constant 0 : index
    %c0_37 = arith.constant 0 : index
    %43 = vector.load %arg15[%c0_36, %c0_37] : memref<8x256xf32, #tpu.memory_space<vmem>>, vector<8x256xf32>
    tpu.vector_store %arg15[%c0_36, %c0_37], %42 {strides = array<i32>} : memref<8x256xf32, #tpu.memory_space<vmem>>, vector<8x256xf32>,
    return
  }
  func.func @transform_0(%arg0: i32) -> (i32, i32) {
    %c0_i32 = arith.constant 0 : i32
    %c0_i32_0 = arith.constant 0 : i32
    return %arg0, %c0_i32 : i32, i32
  }
  func.func @transform_1(%arg0: i32) -> (i32, i32) {
    %c0_i32 = arith.constant 0 : i32
    %c0_i32_0 = arith.constant 0 : i32
    %c0_i32_1 = arith.constant 0 : i32
    return %c0_i32, %c0_i32_0 : i32, i32
  }
  func.func @transform_2(%arg0: i32) -> (i32, i32) {
    %c0_i32 = arith.constant 0 : i32
    %c0_i32_0 = arith.constant 0 : i32
    %c0_i32_1 = arith.constant 0 : i32
    return %c0_i32, %c0_i32_0 : i32, i32
  }
  func.func @transform_3(%arg0: i32) -> (i32, i32) {
    %c0_i32 = arith.constant 0 : i32
    %c0_i32_0 = arith.constant 0 : i32
    %c0_i32_1 = arith.constant 0 : i32
    return %c0_i32, %c0_i32_0 : i32, i32
  }
  func.func @transform_4(%arg0: i32) -> (i32, i32) {
    %c0_i32 = arith.constant 0 : i32
    %c0_i32_0 = arith.constant 0 : i32
    %c0_i32_1 = arith.constant 0 : i32
    return %c0_i32, %c0_i32_0 : i32, i32
  }
  func.func @transform_5(%arg0: i32) -> (i32, i32) {
    %c0_i32 = arith.constant 0 : i32
    %c0_i32_0 = arith.constant 0 : i32
    %c0_i32_1 = arith.constant 0 : i32
    return %c0_i32, %c0_i32_0 : i32, i32
  }
  func.func @transform_6(%arg0: i32) -> (i32, i32) {
    %c0_i32 = arith.constant 0 : i32
    %c0_i32_0 = arith.constant 0 : i32
    %c0_i32_1 = arith.constant 0 : i32
    return %c0_i32, %c0_i32_0 : i32, i32
  }
  func.func @transform_7(%arg0: i32) -> (i32, i32) {
    %c0_i32 = arith.constant 0 : i32
    %c0_i32_0 = arith.constant 0 : i32
    %c0_i32_1 = arith.constant 0 : i32
    return %c0_i32, %c0_i32_0 : i32, i32
  }
  func.func @transform_8(%arg0: i32) -> (i32, i32) {
    %c0_i32 = arith.constant 0 : i32
    %c0_i32_0 = arith.constant 0 : i32
    %c0_i32_1 = arith.constant 0 : i32
    return %c0_i32, %c0_i32_0 : i32, i32
  }
  func.func @transform_9(%arg0: i32) -> (i32, i32) {
    %c0_i32 = arith.constant 0 : i32
    %c0_i32_0 = arith.constant 0 : i32
    %c0_i32_1 = arith.constant 0 : i32
    return %c0_i32, %c0_i32_0 : i32, i32
  }
  func.func @transform_10(%arg0: i32) -> (i32, i32) {
    %c0_i32 = arith.constant 0 : i32
    %c0_i32_0 = arith.constant 0 : i32
    %c0_i32_1 = arith.constant 0 : i32
    return %c0_i32, %c0_i32_0 : i32, i32
  }
  func.func @transform_11(%arg0: i32) -> (i32, i32) {
    %c0_i32 = arith.constant 0 : i32
    %c0_i32_0 = arith.constant 0 : i32
    %c0_i32_1 = arith.constant 0 : i32
    return %c0_i32, %c0_i32_0 : i32, i32
  }
  func.func @transform_12(%arg0: i32) -> (i32, i32) {
    %c0_i32 = arith.constant 0 : i32
    %c0_i32_0 = arith.constant 0 : i32
    %c0_i32_1 = arith.constant 0 : i32
    return %c0_i32, %c0_i32_0 : i32, i32
  }
  func.func @transform_13(%arg0: i32) -> (i32, i32) {
    %c0_i32 = arith.constant 0 : i32
    %c0_i32_0 = arith.constant 0 : i32
    return %arg0, %c0_i32 : i32, i32
  }
  func.func @transform_14(%arg0: i32) -> (i32, i32) {
    %c0_i32 = arith.constant 0 : i32
    %c0_i32_0 = arith.constant 0 : i32
    return %arg0, %c0_i32 : i32, i32
  }
}

</mosaic_0001>

<llo_original>
// kernel: decoding_cnn_forward.1
$region0: #{decoding_cnn_forward.1}
  #allocation0 [shape = 'u32[]', space=smem, size = 0x4, offset = 0x4, fixed_abs, tag = 'smem constant byte address 0x4 - core index']
  #allocation1 [shape = 'u32[144,128]{1,0:T(1,128)}', space=vmem, size = 0x12000, scoped, tag = 'internal scratch']
  %s0 = inlined_call_operand.vmem [shape: f32[8,8], index: 0, kind: input, shape index: {}]
  %s1 = inlined_call_operand.vmem [shape: f32[8,128], index: 1, kind: input, shape index: {}]
  %s2 = inlined_call_operand.vmem [shape: f32[1,128], index: 2, kind: input, shape index: {}]
  %s3 = inlined_call_operand.hbm [shape: f32[128,128], index: 3, kind: input, shape index: {}]
  %s4 = inlined_call_operand.vmem [shape: f32[1,128], index: 4, kind: input, shape index: {}]
  %s5 = inlined_call_operand.hbm [shape: f32[128,256], index: 5, kind: input, shape index: {}]
  %s6 = inlined_call_operand.vmem [shape: f32[1,256], index: 6, kind: input, shape index: {}]
  %s7 = inlined_call_operand.hbm [shape: bf16[256,512], index: 7, kind: input, shape index: {}]
  %s8 = inlined_call_operand.vmem [shape: f32[1,512], index: 8, kind: input, shape index: {}]
  %s9 = inlined_call_operand.hbm [shape: bf16[512,256], index: 9, kind: input, shape index: {}]
  %s10 = inlined_call_operand.vmem [shape: f32[1,256], index: 10, kind: input, shape index: {}]
  %s11 = inlined_call_operand.hbm [shape: bf16[512,256], index: 11, kind: input, shape index: {}]
  %s12 = inlined_call_operand.vmem [shape: f32[1,256], index: 12, kind: input, shape index: {}]
  %s13 = inlined_call_operand.vmem [shape: f32[8,256], index: 13, kind: output, shape index: {0}]
  %s14 = inlined_call_operand.vmem [shape: f32[8,256], index: 14, kind: output, shape index: {1}]
  %15 = xla_tuple %s13, %s14
  %s16 = sld [smem:[#allocation0]]
  $region90: #{decoding_cnn_forward.1} parent=0
    _
  %s18 = ssub.s32 1, %s16
  %s19 = scalar_select 0, %s18, %s16
  $region1: #{decoding_cnn_forward.1} parent=0
    #allocation2 [shape = 'u8[65536]{0}', space=vmem, size = 0x10000, scoped, tag = 'input window, operand 3, single buffered']
    #allocation3 [shape = 's32[1]{0}', space=sflag, size = 0x4, scoped, tag = 'scoped memory for decoding_cnn_forward.1']
    #allocation4 [shape = 'u8[131072]{0}', space=vmem, size = 0x20000, scoped, tag = 'input window, operand 5, single buffered']
    #allocation5 [shape = 's32[1]{0}', space=sflag, size = 0x4, scoped, tag = 'scoped memory for decoding_cnn_forward.1']
    #allocation6 [shape = 'u8[262144]{0}', space=vmem, size = 0x40000, scoped, tag = 'input window, operand 7, single buffered']
    #allocation7 [shape = 'u8[262144]{0}', space=vmem, size = 0x40000, scoped, tag = 'input window, operand 9, single buffered']
    #allocation8 [shape = 's32[1]{0}', space=sflag, size = 0x4, scoped, tag = 'scoped memory for decoding_cnn_forward.1']
    #allocation9 [shape = 'u8[262144]{0}', space=vmem, size = 0x40000, scoped, tag = 'input window, operand 11, single buffered']
    %20 = vsyncpa [#allocation3], 0
    %21 = vsyncpa [#allocation5], 0
    %22 = vsyncpa [#allocation8], 0
    // Predicated region
    $region2: #{decoding_cnn_forward.1} parent=1 // pred_check
      _
    $region3: #{decoding_cnn_forward.1} parent=1 // pred_check_branch
      %24 = sbr.rel (0) target = $region5
    $region4: #{decoding_cnn_forward.1} parent=1 // pred_region
      _
    $region5: #{decoding_cnn_forward.1} parent=1 // pred_fallthru
      _
    // Predicated region
    $region6: #{decoding_cnn_forward.1} parent=1 // pred_check
      _
    $region7: #{decoding_cnn_forward.1} parent=1 // pred_check_branch
      %26 = sbr.rel (0) target = $region9
    $region8: #{decoding_cnn_forward.1} parent=1 // pred_region
      _
    $region9: #{decoding_cnn_forward.1} parent=1 // pred_fallthru
      _
    // Predicated region
    $region10: #{decoding_cnn_forward.1} parent=1 // pred_check
      _
    $region11: #{decoding_cnn_forward.1} parent=1 // pred_check_branch
      %28 = sbr.rel (0) target = $region13
    $region12: #{decoding_cnn_forward.1} parent=1 // pred_region
      _
    $region13: #{decoding_cnn_forward.1} parent=1 // pred_fallthru
      _
    // Predicated region
    $region14: #{decoding_cnn_forward.1} parent=1 // pred_check
      _
    $region15: #{decoding_cnn_forward.1} parent=1 // pred_check_branch
      %30 = sbr.rel (0) target = $region17
    $region16: #{decoding_cnn_forward.1} parent=1 // pred_region
      %s32 = ssub.s32 2048, 2048
      %33 = vsyncadd [#allocation3], %s32
      %s34 = sshll.u32 [#allocation2], 4
      %s35 = int_to_ptr.vmem [resolvable:$true] %s34
      %40 = dma.hbm_to_vmem [thread:$0]  %s3, 2048, %s35, [#allocation3], 128, 128, 8
    $region17: #{decoding_cnn_forward.1} parent=1 // pred_fallthru
      _
    // Predicated region
    $region18: #{decoding_cnn_forward.1} parent=1 // pred_check
      _
    $region19: #{decoding_cnn_forward.1} parent=1 // pred_check_branch
      %42 = sbr.rel (0) target = $region21
    $region20: #{decoding_cnn_forward.1} parent=1 // pred_region
      _
    $region21: #{decoding_cnn_forward.1} parent=1 // pred_fallthru
      _
    // Predicated region
    $region22: #{decoding_cnn_forward.1} parent=1 // pred_check
      _
    $region23: #{decoding_cnn_forward.1} parent=1 // pred_check_branch
      %44 = sbr.rel (0) target = $region25
    $region24: #{decoding_cnn_forward.1} parent=1 // pred_region
      %s46 = ssub.s32 4096, 4096
      %47 = vsyncadd [#allocation5], %s46
      %s48 = sshll.u32 [#allocation4], 4
      %s49 = int_to_ptr.vmem [resolvable:$true] %s48
      %54 = dma.hbm_to_vmem [thread:$0]  %s5, 4096, %s49, [#allocation5], 256, 256, 16
    $region25: #{decoding_cnn_forward.1} parent=1 // pred_fallthru
      _
    // Predicated region
    $region26: #{decoding_cnn_forward.1} parent=1 // pred_check
      _
    $region27: #{decoding_cnn_forward.1} parent=1 // pred_check_branch
      %56 = sbr.rel (0) target = $region29
    $region28: #{decoding_cnn_forward.1} parent=1 // pred_region
      _
    $region29: #{decoding_cnn_forward.1} parent=1 // pred_fallthru
      _
    // Predicated region
    $region30: #{decoding_cnn_forward.1} parent=1 // pred_check
      _
    $region31: #{decoding_cnn_forward.1} parent=1 // pred_check_branch
      %58 = sbr.rel (0) target = $region33
    $region32: #{decoding_cnn_forward.1} parent=1 // pred_region
      %s60 = ssub.s32 8192, 8192
      %61 = vsyncadd [#allocation5], %s60
      %s62 = sshll.u32 [#allocation6], 4
      %s63 = int_to_ptr.vmem [resolvable:$true] %s62
      %68 = dma.hbm_to_vmem [thread:$0]  %s7, 8192, %s63, [#allocation5], 256, 256, 16
    $region33: #{decoding_cnn_forward.1} parent=1 // pred_fallthru
      _
    // Predicated region
    $region34: #{decoding_cnn_forward.1} parent=1 // pred_check
      _
    $region35: #{decoding_cnn_forward.1} parent=1 // pred_check_branch
      %70 = sbr.rel (0) target = $region37
    $region36: #{decoding_cnn_forward.1} parent=1 // pred_region
      _
    $region37: #{decoding_cnn_forward.1} parent=1 // pred_fallthru
      _
    // Predicated region
    $region38: #{decoding_cnn_forward.1} parent=1 // pred_check
      _
    $region39: #{decoding_cnn_forward.1} parent=1 // pred_check_branch
      %72 = sbr.rel (0) target = $region41
    $region40: #{decoding_cnn_forward.1} parent=1 // pred_region
      %s74 = ssub.s32 8192, 8192
      %75 = vsyncadd [#allocation8], %s74
      %s76 = sshll.u32 [#allocation7], 4
      %s77 = int_to_ptr.vmem [resolvable:$true] %s76
      %82 = dma.hbm_to_vmem [thread:$0]  %s9, 8192, %s77, [#allocation8], 128, 128, 8
    $region41: #{decoding_cnn_forward.1} parent=1 // pred_fallthru
      _
    // Predicated region
    $region42: #{decoding_cnn_forward.1} parent=1 // pred_check
      _
    $region43: #{decoding_cnn_forward.1} parent=1 // pred_check_branch
      %84 = sbr.rel (0) target = $region45
    $region44: #{decoding_cnn_forward.1} parent=1 // pred_region
      _
    $region45: #{decoding_cnn_forward.1} parent=1 // pred_fallthru
      _
    // Predicated region
    $region46: #{decoding_cnn_forward.1} parent=1 // pred_check
      _
    $region47: #{decoding_cnn_forward.1} parent=1 // pred_check_branch
      %86 = sbr.rel (0) target = $region49
    $region48: #{decoding_cnn_forward.1} parent=1 // pred_region
      %s88 = ssub.s32 8192, 8192
      %89 = vsyncadd [#allocation8], %s88
      %s90 = sshll.u32 [#allocation9], 4
      %s91 = int_to_ptr.vmem [resolvable:$true] %s90
      %96 = dma.hbm_to_vmem [thread:$0]  %s11, 8192, %s91, [#allocation8], 128, 128, 8
    $region49: #{decoding_cnn_forward.1} parent=1 // pred_fallthru
      _
    // Predicated region
    $region50: #{decoding_cnn_forward.1} parent=1 // pred_check
      _
    $region51: #{decoding_cnn_forward.1} parent=1 // pred_check_branch
      %98 = sbr.rel (0) target = $region53
    $region52: #{decoding_cnn_forward.1} parent=1 // pred_region
      _
    $region53: #{decoding_cnn_forward.1} parent=1 // pred_fallthru
      _
    // Predicated region
    $region54: #{decoding_cnn_forward.1} parent=1 // pred_check
      _
    $region55: #{decoding_cnn_forward.1} parent=1 // pred_check_branch
      %100 = sbr.rel (0) target = $region57
    $region56: #{decoding_cnn_forward.1} parent=1 // pred_region
      %101 = dma.done [#allocation3], 2048
    $region57: #{decoding_cnn_forward.1} parent=1 // pred_fallthru
      _
    // Predicated region
    $region58: #{decoding_cnn_forward.1} parent=1 // pred_check
      _
    $region59: #{decoding_cnn_forward.1} parent=1 // pred_check_branch
      %103 = sbr.rel (0) target = $region61
    $region60: #{decoding_cnn_forward.1} parent=1 // pred_region
      %104 = dma.done [#allocation5], 4096
    $region61: #{decoding_cnn_forward.1} parent=1 // pred_fallthru
      _
    // Predicated region
    $region62: #{decoding_cnn_forward.1} parent=1 // pred_check
      _
    $region63: #{decoding_cnn_forward.1} parent=1 // pred_check_branch
      %106 = sbr.rel (0) target = $region65
    $region64: #{decoding_cnn_forward.1} parent=1 // pred_region
      %107 = dma.done [#allocation5], 8192
    $region65: #{decoding_cnn_forward.1} parent=1 // pred_fallthru
      _
    // Predicated region
    $region66: #{decoding_cnn_forward.1} parent=1 // pred_check
      _
    $region67: #{decoding_cnn_forward.1} parent=1 // pred_check_branch
      %109 = sbr.rel (0) target = $region69
    $region68: #{decoding_cnn_forward.1} parent=1 // pred_region
      %110 = dma.done [#allocation8], 8192
    $region69: #{decoding_cnn_forward.1} parent=1 // pred_fallthru
      _
    // Predicated region
    $region70: #{decoding_cnn_forward.1} parent=1 // pred_check
      _
    $region71: #{decoding_cnn_forward.1} parent=1 // pred_check_branch
      %112 = sbr.rel (0) target = $region73
    $region72: #{decoding_cnn_forward.1} parent=1 // pred_region
      %113 = dma.done [#allocation8], 8192
    $region73: #{decoding_cnn_forward.1} parent=1 // pred_fallthru
      _
    %v114 = vld [vmem:[%s0] sm:$0xff]
    %v115 = vld [vmem:[%s1] sm:$0xff]
    %v116 = vld [vmem:[%s2] sm:$0x1]
    %v118 = vlaneseq
    %v119 = vshrl.u32 %v118, 7
    %v120 = vsub.s32 0, %v119
    %v121 = vrot.slane %v116, %v120
    %vm123 = vcmask 64512
    %v125 = vsel %vm123, %v114, 0
    %127 = vmatprep.subr.mxu0 0.0
    %128 = vmatpush1.msra.mxu0 %v115
    %129 = vmatprep.subr.mxu0 0.0
    %130 = vmatpush1.msra.mxu0 0.0
    %131 = vmatprep.subr.mxu0 0.0
    %132 = vmatpush1.msra.mxu0 0.0
    %133 = vmatprep.subr.mxu0 0.0
    %134 = vmatpush1.msra.mxu0 0.0
    %135 = vmatprep.subr.mxu0 0.0
    %136 = vmatpush1.msra.mxu0 0.0
    %137 = vmatprep.subr.mxu0 0.0
    %138 = vmatpush1.msra.mxu0 0.0
    %139 = vmatprep.subr.mxu0 0.0
    %140 = vmatpush1.msra.mxu0 0.0
    %141 = vmatprep.subr.mxu0 0.0
    %142 = vmatpush1.msra.mxu0 0.0
    %143 = vmatprep.subr.mxu0 0.0
    %144 = vmatpush1.msra.mxu0 0.0
    %145 = vmatprep.subr.mxu0 0.0
    %146 = vmatpush1.msra.mxu0 0.0
    %147 = vmatprep.subr.mxu0 0.0
    %148 = vmatpush1.msra.mxu0 0.0
    %149 = vmatprep.subr.mxu0 0.0
    %150 = vmatpush1.msra.mxu0 0.0
    %151 = vmatprep.subr.mxu0 0.0
    %152 = vmatpush1.msra.mxu0 0.0
    %153 = vmatprep.subr.mxu0 0.0
    %154 = vmatpush1.msra.mxu0 0.0
    %155 = vmatprep.subr.mxu0 0.0
    %156 = vmatpush1.msra.mxu0 0.0
    %157 = vmatprep.subr.mxu0 0.0
    %158 = vmatpush1.msra.mxu0 0.0
    %159 = vmatprep.subr.mxu0 0.0
    %160 = vmatpush1.msra.mxu0 0.0
    %161 = vmatprep.subr.mxu0 0.0
    %162 = vmatpush1.msra.mxu0 0.0
    %163 = vmatprep.subr.mxu0 0.0
    %164 = vmatpush1.msra.mxu0 0.0
    %165 = vmatprep.subr.mxu0 0.0
    %166 = vmatpush1.msra.mxu0 0.0
    %167 = vmatprep.subr.mxu0 0.0
    %168 = vmatpush1.msra.mxu0 0.0
    %169 = vmatprep.subr.mxu0 0.0
    %170 = vmatpush1.msra.mxu0 0.0
    %171 = vmatprep.subr.mxu0 0.0
    %172 = vmatpush1.msra.mxu0 0.0
    %173 = vmatprep.subr.mxu0 0.0
    %174 = vmatpush1.msra.mxu0 0.0
    %175 = vmatprep.subr.mxu0 0.0
    %176 = vmatpush1.msra.mxu0 0.0
    %177 = vmatprep.subr.mxu0 0.0
    %178 = vmatpush1.msra.mxu0 0.0
    %179 = vmatprep.subr.mxu0 0.0
    %180 = vmatpush1.msra.mxu0 0.0
    %181 = vmatprep.subr.mxu0 0.0
    %182 = vmatpush1.msra.mxu0 0.0
    %183 = vmatprep.subr.mxu0 0.0
    %184 = vmatpush1.msra.mxu0 0.0
    %185 = vmatprep.subr.mxu0 0.0
    %186 = vmatpush1.msra.mxu0 0.0
    %187 = vmatprep.subr.mxu0 0.0
    %188 = vmatpush1.msra.mxu0 0.0
    %189 = vmatprep.subr.mxu0 0.0
    %190 = vmatpush1.msra.mxu0 0.0
    %191 = vmatprep.mubr.f32.mxu0 0.0
    %192 = vmatmul.mubr.f32.gmra.mrb[0].mxu0 %v125
    %v193 = vpop.f32.mrb[0].mxu0
    %v194 = vadd.f32 %v121, %v193
    %v195 = vpop.f32.mrb[0].mxu0
    %196 = vdwg.mxu0
    %v197 = vmax.f32 %v194, 0.0
    %v198 = vld [vmem:[#allocation2] sm:$0xff]
    %v199 = vld [vmem:[#allocation2 + $0x8] sm:$0xff]
    %v200 = vld [vmem:[#allocation2 + $0x10] sm:$0xff]
    %v201 = vld [vmem:[#allocation2 + $0x18] sm:$0xff]
    %v202 = vld [vmem:[#allocation2 + $0x20] sm:$0xff]
    %v203 = vld [vmem:[#allocation2 + $0x28] sm:$0xff]
    %v204 = vld [vmem:[#allocation2 + $0x30] sm:$0xff]
    %v205 = vld [vmem:[#allocation2 + $0x38] sm:$0xff]
    %v206 = vld [vmem:[#allocation2 + $0x40] sm:$0xff]
    %v207 = vld [vmem:[#allocation2 + $0x48] sm:$0xff]
    %v208 = vld [vmem:[#allocation2 + $0x50] sm:$0xff]
    %v209 = vld [vmem:[#allocation2 + $0x58] sm:$0xff]
    %v210 = vld [vmem:[#allocation2 + $0x60] sm:$0xff]
    %v211 = vld [vmem:[#allocation2 + $0x68] sm:$0xff]
    %v212 = vld [vmem:[#allocation2 + $0x70] sm:$0xff]
    %v213 = vld [vmem:[#allocation2 + $0x78] sm:$0xff]
    %v214 = vld [vmem:[%s4] sm:$0x1]
    %v216 = vlaneseq
    %v217 = vshrl.u32 %v216, 7
    %v218 = vsub.s32 0, %v217
    %v219 = vrot.slane %v214, %v218
    %221 = vmatprep.subr.mxu0 0.0
    %222 = vmatpush1.msra.mxu0 %v198
    %223 = vmatprep.subr.mxu0 0.0
    %224 = vmatpush1.msra.mxu0 %v199
    %225 = vmatprep.subr.mxu0 0.0
    %226 = vmatpush1.msra.mxu0 %v200
    %227 = vmatprep.subr.mxu0 0.0
    %228 = vmatpush1.msra.mxu0 %v201
    %229 = vmatprep.subr.mxu0 0.0
    %230 = vmatpush1.msra.mxu0 %v202
    %231 = vmatprep.subr.mxu0 0.0
    %232 = vmatpush1.msra.mxu0 %v203
    %233 = vmatprep.subr.mxu0 0.0
    %234 = vmatpush1.msra.mxu0 %v204
    %235 = vmatprep.subr.mxu0 0.0
    %236 = vmatpush1.msra.mxu0 %v205
    %237 = vmatprep.subr.mxu0 0.0
    %238 = vmatpush1.msra.mxu0 %v206
    %239 = vmatprep.subr.mxu0 0.0
    %240 = vmatpush1.msra.mxu0 %v207
    %241 = vmatprep.subr.mxu0 0.0
    %242 = vmatpush1.msra.mxu0 %v208
    %243 = vmatprep.subr.mxu0 0.0
    %244 = vmatpush1.msra.mxu0 %v209
    %245 = vmatprep.subr.mxu0 0.0
    %246 = vmatpush1.msra.mxu0 %v210
    %247 = vmatprep.subr.mxu0 0.0
    %248 = vmatpush1.msra.mxu0 %v211
    %249 = vmatprep.subr.mxu0 0.0
    %250 = vmatpush1.msra.mxu0 %v212
    %251 = vmatprep.subr.mxu0 0.0
    %252 = vmatpush1.msra.mxu0 %v213
    %253 = vmatprep.subr.mxu0 0.0
    %254 = vmatpush1.msra.mxu0 0.0
    %255 = vmatprep.subr.mxu0 0.0
    %256 = vmatpush1.msra.mxu0 0.0
    %257 = vmatprep.subr.mxu0 0.0
    %258 = vmatpush1.msra.mxu0 0.0
    %259 = vmatprep.subr.mxu0 0.0
    %260 = vmatpush1.msra.mxu0 0.0
    %261 = vmatprep.subr.mxu0 0.0
    %262 = vmatpush1.msra.mxu0 0.0
    %263 = vmatprep.subr.mxu0 0.0
    %264 = vmatpush1.msra.mxu0 0.0
    %265 = vmatprep.subr.mxu0 0.0
    %266 = vmatpush1.msra.mxu0 0.0
    %267 = vmatprep.subr.mxu0 0.0
    %268 = vmatpush1.msra.mxu0 0.0
    %269 = vmatprep.subr.mxu0 0.0
    %270 = vmatpush1.msra.mxu0 0.0
    %271 = vmatprep.subr.mxu0 0.0
    %272 = vmatpush1.msra.mxu0 0.0
    %273 = vmatprep.subr.mxu0 0.0
    %274 = vmatpush1.msra.mxu0 0.0
    %275 = vmatprep.subr.mxu0 0.0
    %276 = vmatpush1.msra.mxu0 0.0
    %277 = vmatprep.subr.mxu0 0.0
    %278 = vmatpush1.msra.mxu0 0.0
    %279 = vmatprep.subr.mxu0 0.0
    %280 = vmatpush1.msra.mxu0 0.0
    %281 = vmatprep.subr.mxu0 0.0
    %282 = vmatpush1.msra.mxu0 0.0
    %283 = vmatprep.subr.mxu0 0.0
    %284 = vmatpush1.msra.mxu0 0.0
    %285 = vmatprep.mubr.f32.mxu0 0.0
    %286 = vmatmul.mubr.f32.gmra.mrb[0].mxu0 %v197
    %v287 = vpop.f32.mrb[0].mxu0
    %v288 = vadd.f32 %v219, %v287
    %v289 = vpop.f32.mrb[0].mxu0
    %290 = vdwg.mxu0
    %v291 = vmax.f32 %v288, 0.0
    %v292 = vld [vmem:[#allocation4] sm:$0xff]
    %v293 = vld [vmem:[#allocation4 + $0x8] sm:$0xff]
    %v294 = vld [vmem:[#allocation4 + $0x10] sm:$0xff]
    %v295 = vld [vmem:[#allocation4 + $0x18] sm:$0xff]
    %v296 = vld [vmem:[#allocation4 + $0x20] sm:$0xff]
    %v297 = vld [vmem:[#allocation4 + $0x28] sm:$0xff]
    %v298 = vld [vmem:[#allocation4 + $0x30] sm:$0xff]
    %v299 = vld [vmem:[#allocation4 + $0x38] sm:$0xff]
    %v300 = vld [vmem:[#allocation4 + $0x40] sm:$0xff]
    %v301 = vld [vmem:[#allocation4 + $0x48] sm:$0xff]
    %v302 = vld [vmem:[#allocation4 + $0x50] sm:$0xff]
    %v303 = vld [vmem:[#allocation4 + $0x58] sm:$0xff]
    %v304 = vld [vmem:[#allocation4 + $0x60] sm:$0xff]
    %v305 = vld [vmem:[#allocation4 + $0x68] sm:$0xff]
    %v306 = vld [vmem:[#allocation4 + $0x70] sm:$0xff]
    %v307 = vld [vmem:[#allocation4 + $0x78] sm:$0xff]
    %v308 = vld [vmem:[#allocation4 + $0x80] sm:$0xff]
    %v309 = vld [vmem:[#allocation4 + $0x88] sm:$0xff]
    %v310 = vld [vmem:[#allocation4 + $0x90] sm:$0xff]
    %v311 = vld [vmem:[#allocation4 + $0x98] sm:$0xff]
    %v312 = vld [vmem:[#allocation4 + $0xa0] sm:$0xff]
    %v313 = vld [vmem:[#allocation4 + $0xa8] sm:$0xff]
    %v314 = vld [vmem:[#allocation4 + $0xb0] sm:$0xff]
    %v315 = vld [vmem:[#allocation4 + $0xb8] sm:$0xff]
    %v316 = vld [vmem:[#allocation4 + $0xc0] sm:$0xff]
    %v317 = vld [vmem:[#allocation4 + $0xc8] sm:$0xff]
    %v318 = vld [vmem:[#allocation4 + $0xd0] sm:$0xff]
    %v319 = vld [vmem:[#allocation4 + $0xd8] sm:$0xff]
    %v320 = vld [vmem:[#allocation4 + $0xe0] sm:$0xff]
    %v321 = vld [vmem:[#allocation4 + $0xe8] sm:$0xff]
    %v322 = vld [vmem:[#allocation4 + $0xf0] sm:$0xff]
    %v323 = vld [vmem:[#allocation4 + $0xf8] sm:$0xff]
    %v324 = vld [vmem:[%s6] sm:$0x3]
    %v326 = vlaneseq
    %v327 = vshrl.u32 %v326, 7
    %v328 = vsub.s32 0, %v327
    %v329 = vrot.slane %v324, %v328
    %v330 = vlaneseq
    %v331 = vshrl.u32 %v330, 7
    %v332 = vsub.s32 1, %v331
    %v333 = vrot.slane %v324, %v332
    %336 = vmatprep.subr.mxu0 %v293
    %337 = vmatpush1.msra.mxu0 %v292
    %338 = vmatprep.subr.mxu0 %v295
    %339 = vmatpush1.msra.mxu0 %v294
    %340 = vmatprep.subr.mxu0 %v297
    %341 = vmatpush1.msra.mxu0 %v296
    %342 = vmatprep.subr.mxu0 %v299
    %343 = vmatpush1.msra.mxu0 %v298
    %344 = vmatprep.subr.mxu0 %v301
    %345 = vmatpush1.msra.mxu0 %v300
    %346 = vmatprep.subr.mxu0 %v303
    %347 = vmatpush1.msra.mxu0 %v302
    %348 = vmatprep.subr.mxu0 %v305
    %349 = vmatpush1.msra.mxu0 %v304
    %350 = vmatprep.subr.mxu0 %v307
    %351 = vmatpush1.msra.mxu0 %v306
    %352 = vmatprep.subr.mxu0 %v309
    %353 = vmatpush1.msra.mxu0 %v308
    %354 = vmatprep.subr.mxu0 %v311
    %355 = vmatpush1.msra.mxu0 %v310
    %356 = vmatprep.subr.mxu0 %v313
    %357 = vmatpush1.msra.mxu0 %v312
    %358 = vmatprep.subr.mxu0 %v315
    %359 = vmatpush1.msra.mxu0 %v314
    %360 = vmatprep.subr.mxu0 %v317
    %361 = vmatpush1.msra.mxu0 %v316
    %362 = vmatprep.subr.mxu0 %v319
    %363 = vmatpush1.msra.mxu0 %v318
    %364 = vmatprep.subr.mxu0 %v321
    %365 = vmatpush1.msra.mxu0 %v320
    %366 = vmatprep.subr.mxu0 %v323
    %367 = vmatpush1.msra.mxu0 %v322
    %368 = vmatprep.subr.mxu0 0.0
    %369 = vmatpush1.msra.mxu0 0.0
    %370 = vmatprep.subr.mxu0 0.0
    %371 = vmatpush1.msra.mxu0 0.0
    %372 = vmatprep.subr.mxu0 0.0
    %373 = vmatpush1.msra.mxu0 0.0
    %374 = vmatprep.subr.mxu0 0.0
    %375 = vmatpush1.msra.mxu0 0.0
    %376 = vmatprep.subr.mxu0 0.0
    %377 = vmatpush1.msra.mxu0 0.0
    %378 = vmatprep.subr.mxu0 0.0
    %379 = vmatpush1.msra.mxu0 0.0
    %380 = vmatprep.subr.mxu0 0.0
    %381 = vmatpush1.msra.mxu0 0.0
    %382 = vmatprep.subr.mxu0 0.0
    %383 = vmatpush1.msra.mxu0 0.0
    %384 = vmatprep.subr.mxu0 0.0
    %385 = vmatpush1.msra.mxu0 0.0
    %386 = vmatprep.subr.mxu0 0.0
    %387 = vmatpush1.msra.mxu0 0.0
    %388 = vmatprep.subr.mxu0 0.0
    %389 = vmatpush1.msra.mxu0 0.0
    %390 = vmatprep.subr.mxu0 0.0
    %391 = vmatpush1.msra.mxu0 0.0
    %392 = vmatprep.subr.mxu0 0.0
    %393 = vmatpush1.msra.mxu0 0.0
    %394 = vmatprep.subr.mxu0 0.0
    %395 = vmatpush1.msra.mxu0 0.0
    %396 = vmatprep.subr.mxu0 0.0
    %397 = vmatpush1.msra.mxu0 0.0
    %398 = vmatprep.subr.mxu0 0.0
    %399 = vmatpush1.msra.mxu0 0.0
    %400 = vmatprep.mubr.f32.mxu0 0.0
    %401 = vmatmul.mubr.f32.gmra.mrb[0].mxu0 %v291
    %v402 = vpop.f32.mrb[0].mxu0
    %v403 = vadd.f32 %v329, %v402
    %v404 = vpop.f32.mrb[0].mxu0
    %v405 = vadd.f32 %v333, %v404
    %406 = vdwg.mxu0
    %v407 = vmax.f32 %v403, 0.0
    %v408 = vmax.f32 %v405, 0.0
    %v409 = vpack.c.bf16 %v407, %v407
    %v410 = vpack.c.bf16 %v408, %v408
    %v411 = vld [vmem:[#allocation6] sm:$0xff]
    %v412 = vld [vmem:[#allocation6 + $0x8] sm:$0xff]
    %v413 = vld [vmem:[#allocation6 + $0x10] sm:$0xff]
    %v414 = vld [vmem:[#allocation6 + $0x18] sm:$0xff]
    %v415 = vld [vmem:[#allocation6 + $0x20] sm:$0xff]
    %v416 = vld [vmem:[#allocation6 + $0x28] sm:$0xff]
    %v417 = vld [vmem:[#allocation6 + $0x30] sm:$0xff]
    %v418 = vld [vmem:[#allocation6 + $0x38] sm:$0xff]
    %v419 = vld [vmem:[#allocation6 + $0x40] sm:$0xff]
    %v420 = vld [vmem:[#allocation6 + $0x48] sm:$0xff]
    %v421 = vld [vmem:[#allocation6 + $0x50] sm:$0xff]
    %v422 = vld [vmem:[#allocation6 + $0x58] sm:$0xff]
    %v423 = vld [vmem:[#allocation6 + $0x60] sm:$0xff]
    %v424 = vld [vmem:[#allocation6 + $0x68] sm:$0xff]
    %v425 = vld [vmem:[#allocation6 + $0x70] sm:$0xff]
    %v426 = vld [vmem:[#allocation6 + $0x78] sm:$0xff]
    %v427 = vld [vmem:[#allocation6 + $0x80] sm:$0xff]
    %v428 = vld [vmem:[#allocation6 + $0x88] sm:$0xff]
    %v429 = vld [vmem:[#allocation6 + $0x90] sm:$0xff]
    %v430 = vld [vmem:[#allocation6 + $0x98] sm:$0xff]
    %v431 = vld [vmem:[#allocation6 + $0xa0] sm:$0xff]
    %v432 = vld [vmem:[#allocation6 + $0xa8] sm:$0xff]
    %v433 = vld [vmem:[#allocation6 + $0xb0] sm:$0xff]
    %v434 = vld [vmem:[#allocation6 + $0xb8] sm:$0xff]
    %v435 = vld [vmem:[#allocation6 + $0xc0] sm:$0xff]
    %v436 = vld [vmem:[#allocation6 + $0xc8] sm:$0xff]
    %v437 = vld [vmem:[#allocation6 + $0xd0] sm:$0xff]
    %v438 = vld [vmem:[#allocation6 + $0xd8] sm:$0xff]
    %v439 = vld [vmem:[#allocation6 + $0xe0] sm:$0xff]
    %v440 = vld [vmem:[#allocation6 + $0xe8] sm:$0xff]
    %v441 = vld [vmem:[#allocation6 + $0xf0] sm:$0xff]
    %v442 = vld [vmem:[#allocation6 + $0xf8] sm:$0xff]
    %v443 = vld [vmem:[#allocation6 + $0x100] sm:$0xff]
    %v444 = vld [vmem:[#allocation6 + $0x108] sm:$0xff]
    %v445 = vld [vmem:[#allocation6 + $0x110] sm:$0xff]
    %v446 = vld [vmem:[#allocation6 + $0x118] sm:$0xff]
    %v447 = vld [vmem:[#allocation6 + $0x120] sm:$0xff]
    %v448 = vld [vmem:[#allocation6 + $0x128] sm:$0xff]
    %v449 = vld [vmem:[#allocation6 + $0x130] sm:$0xff]
    %v450 = vld [vmem:[#allocation6 + $0x138] sm:$0xff]
    %v451 = vld [vmem:[#allocation6 + $0x140] sm:$0xff]
    %v452 = vld [vmem:[#allocation6 + $0x148] sm:$0xff]
    %v453 = vld [vmem:[#allocation6 + $0x150] sm:$0xff]
    %v454 = vld [vmem:[#allocation6 + $0x158] sm:$0xff]
    %v455 = vld [vmem:[#allocation6 + $0x160] sm:$0xff]
    %v456 = vld [vmem:[#allocation6 + $0x168] sm:$0xff]
    %v457 = vld [vmem:[#allocation6 + $0x170] sm:$0xff]
    %v458 = vld [vmem:[#allocation6 + $0x178] sm:$0xff]
    %v459 = vld [vmem:[#allocation6 + $0x180] sm:$0xff]
    %v460 = vld [vmem:[#allocation6 + $0x188] sm:$0xff]
    %v461 = vld [vmem:[#allocation6 + $0x190] sm:$0xff]
    %v462 = vld [vmem:[#allocation6 + $0x198] sm:$0xff]
    %v463 = vld [vmem:[#allocation6 + $0x1a0] sm:$0xff]
    %v464 = vld [vmem:[#allocation6 + $0x1a8] sm:$0xff]
    %v465 = vld [vmem:[#allocation6 + $0x1b0] sm:$0xff]
    %v466 = vld [vmem:[#allocation6 + $0x1b8] sm:$0xff]
    %v467 = vld [vmem:[#allocation6 + $0x1c0] sm:$0xff]
    %v468 = vld [vmem:[#allocation6 + $0x1c8] sm:$0xff]
    %v469 = vld [vmem:[#allocation6 + $0x1d0] sm:$0xff]
    %v470 = vld [vmem:[#allocation6 + $0x1d8] sm:$0xff]
    %v471 = vld [vmem:[#allocation6 + $0x1e0] sm:$0xff]
    %v472 = vld [vmem:[#allocation6 + $0x1e8] sm:$0xff]
    %v473 = vld [vmem:[#allocation6 + $0x1f0] sm:$0xff]
    %v474 = vld [vmem:[#allocation6 + $0x1f8] sm:$0xff]
    %v475 = vld [vmem:[%s8] sm:$0xf]
    %v477 = vlaneseq
    %v478 = vshrl.u32 %v477, 7
    %v479 = vsub.s32 0, %v478
    %v480 = vrot.slane %v475, %v479
    %v481 = vlaneseq
    %v482 = vshrl.u32 %v481, 7
    %v483 = vsub.s32 1, %v482
    %v484 = vrot.slane %v475, %v483
    %v485 = vlaneseq
    %v486 = vshrl.u32 %v485, 7
    %v487 = vsub.s32 2, %v486
    %v488 = vrot.slane %v475, %v487
    %v489 = vlaneseq
    %v490 = vshrl.u32 %v489, 7
    %v491 = vsub.s32 3, %v490
    %v492 = vrot.slane %v475, %v491
    %v561 = vunpack.c.l.b16 %v411
    %v562 = vunpack.c.h.b16 %v411
    %v563 = vunpack.c.l.b16 %v412
    %v564 = vunpack.c.h.b16 %v412
    %v565 = vunpack.c.l.b16 %v413
    %v566 = vunpack.c.h.b16 %v413
    %v567 = vunpack.c.l.b16 %v414
    %v568 = vunpack.c.h.b16 %v414
    %v569 = vunpack.c.l.b16 %v415
    %v570 = vunpack.c.h.b16 %v415
    %v571 = vunpack.c.l.b16 %v416
    %v572 = vunpack.c.h.b16 %v416
    %v573 = vunpack.c.l.b16 %v417
    %v574 = vunpack.c.h.b16 %v417
    %v575 = vunpack.c.l.b16 %v418
    %v576 = vunpack.c.h.b16 %v418
    %v577 = vunpack.c.l.b16 %v419
    %v578 = vunpack.c.h.b16 %v419
    %v579 = vunpack.c.l.b16 %v420
    %v580 = vunpack.c.h.b16 %v420
    %v581 = vunpack.c.l.b16 %v421
    %v582 = vunpack.c.h.b16 %v421
    %v583 = vunpack.c.l.b16 %v422
    %v584 = vunpack.c.h.b16 %v422
    %v585 = vunpack.c.l.b16 %v423
    %v586 = vunpack.c.h.b16 %v423
    %v587 = vunpack.c.l.b16 %v424
    %v588 = vunpack.c.h.b16 %v424
    %v589 = vunpack.c.l.b16 %v425
    %v590 = vunpack.c.h.b16 %v425
    %v591 = vunpack.c.l.b16 %v426
    %v592 = vunpack.c.h.b16 %v426
    %v593 = vunpack.c.l.b16 %v427
    %v594 = vunpack.c.h.b16 %v427
    %v595 = vunpack.c.l.b16 %v428
    %v596 = vunpack.c.h.b16 %v428
    %v597 = vunpack.c.l.b16 %v429
    %v598 = vunpack.c.h.b16 %v429
    %v599 = vunpack.c.l.b16 %v430
    %v600 = vunpack.c.h.b16 %v430
    %v601 = vunpack.c.l.b16 %v431
    %v602 = vunpack.c.h.b16 %v431
    %v603 = vunpack.c.l.b16 %v432
    %v604 = vunpack.c.h.b16 %v432
    %v605 = vunpack.c.l.b16 %v433
    %v606 = vunpack.c.h.b16 %v433
    %v607 = vunpack.c.l.b16 %v434
    %v608 = vunpack.c.h.b16 %v434
    %v609 = vunpack.c.l.b16 %v435
    %v610 = vunpack.c.h.b16 %v435
    %v611 = vunpack.c.l.b16 %v436
    %v612 = vunpack.c.h.b16 %v436
    %v613 = vunpack.c.l.b16 %v437
    %v614 = vunpack.c.h.b16 %v437
    %v615 = vunpack.c.l.b16 %v438
    %v616 = vunpack.c.h.b16 %v438
    %v617 = vunpack.c.l.b16 %v439
    %v618 = vunpack.c.h.b16 %v439
    %v619 = vunpack.c.l.b16 %v440
    %v620 = vunpack.c.h.b16 %v440
    %v621 = vunpack.c.l.b16 %v441
    %v622 = vunpack.c.h.b16 %v441
    %v623 = vunpack.c.l.b16 %v442
    %v624 = vunpack.c.h.b16 %v442
    %v625 = vunpack.c.l.b16 %v443
    %v626 = vunpack.c.h.b16 %v443
    %v627 = vunpack.c.l.b16 %v444
    %v628 = vunpack.c.h.b16 %v444
    %v629 = vunpack.c.l.b16 %v445
    %v630 = vunpack.c.h.b16 %v445
    %v631 = vunpack.c.l.b16 %v446
    %v632 = vunpack.c.h.b16 %v446
    %v633 = vunpack.c.l.b16 %v447
    %v634 = vunpack.c.h.b16 %v447
    %v635 = vunpack.c.l.b16 %v448
    %v636 = vunpack.c.h.b16 %v448
    %v637 = vunpack.c.l.b16 %v449
    %v638 = vunpack.c.h.b16 %v449
    %v639 = vunpack.c.l.b16 %v450
    %v640 = vunpack.c.h.b16 %v450
    %v641 = vunpack.c.l.b16 %v451
    %v642 = vunpack.c.h.b16 %v451
    %v643 = vunpack.c.l.b16 %v452
    %v644 = vunpack.c.h.b16 %v452
    %v645 = vunpack.c.l.b16 %v453
    %v646 = vunpack.c.h.b16 %v453
    %v647 = vunpack.c.l.b16 %v454
    %v648 = vunpack.c.h.b16 %v454
    %v649 = vunpack.c.l.b16 %v455
    %v650 = vunpack.c.h.b16 %v455
    %v651 = vunpack.c.l.b16 %v456
    %v652 = vunpack.c.h.b16 %v456
    %v653 = vunpack.c.l.b16 %v457
    %v654 = vunpack.c.h.b16 %v457
    %v655 = vunpack.c.l.b16 %v458
    %v656 = vunpack.c.h.b16 %v458
    %v657 = vunpack.c.l.b16 %v459
    %v658 = vunpack.c.h.b16 %v459
    %v659 = vunpack.c.l.b16 %v460
    %v660 = vunpack.c.h.b16 %v460
    %v661 = vunpack.c.l.b16 %v461
    %v662 = vunpack.c.h.b16 %v461
    %v663 = vunpack.c.l.b16 %v462
    %v664 = vunpack.c.h.b16 %v462
    %v665 = vunpack.c.l.b16 %v463
    %v666 = vunpack.c.h.b16 %v463
    %v667 = vunpack.c.l.b16 %v464
    %v668 = vunpack.c.h.b16 %v464
    %v669 = vunpack.c.l.b16 %v465
    %v670 = vunpack.c.h.b16 %v465
    %v671 = vunpack.c.l.b16 %v466
    %v672 = vunpack.c.h.b16 %v466
    %v673 = vunpack.c.l.b16 %v467
    %v674 = vunpack.c.h.b16 %v467
    %v675 = vunpack.c.l.b16 %v468
    %v676 = vunpack.c.h.b16 %v468
    %v677 = vunpack.c.l.b16 %v469
    %v678 = vunpack.c.h.b16 %v469
    %v679 = vunpack.c.l.b16 %v470
    %v680 = vunpack.c.h.b16 %v470
    %v681 = vunpack.c.l.b16 %v471
    %v682 = vunpack.c.h.b16 %v471
    %v683 = vunpack.c.l.b16 %v472
    %v684 = vunpack.c.h.b16 %v472
    %v685 = vunpack.c.l.b16 %v473
    %v686 = vunpack.c.h.b16 %v473
    %v687 = vunpack.c.l.b16 %v474
    %v688 = vunpack.c.h.b16 %v474
    %v689 = vpack.c.b16 %v565, %v561
    %v690 = vpack.c.b16 %v566, %v562
    %v691 = vpack.c.b16 %v567, %v563
    %v692 = vpack.c.b16 %v568, %v564
    %v693 = vpack.c.b16 %v573, %v569
    %v694 = vpack.c.b16 %v574, %v570
    %v695 = vpack.c.b16 %v575, %v571
    %v696 = vpack.c.b16 %v576, %v572
    %v697 = vpack.c.b16 %v581, %v577
    %v698 = vpack.c.b16 %v582, %v578
    %v699 = vpack.c.b16 %v583, %v579
    %v700 = vpack.c.b16 %v584, %v580
    %v701 = vpack.c.b16 %v589, %v585
    %v702 = vpack.c.b16 %v590, %v586
    %v703 = vpack.c.b16 %v591, %v587
    %v704 = vpack.c.b16 %v592, %v588
    %v705 = vpack.c.b16 %v597, %v593
    %v706 = vpack.c.b16 %v598, %v594
    %v707 = vpack.c.b16 %v599, %v595
    %v708 = vpack.c.b16 %v600, %v596
    %v709 = vpack.c.b16 %v605, %v601
    %v710 = vpack.c.b16 %v606, %v602
    %v711 = vpack.c.b16 %v607, %v603
    %v712 = vpack.c.b16 %v608, %v604
    %v713 = vpack.c.b16 %v613, %v609
    %v714 = vpack.c.b16 %v614, %v610
    %v715 = vpack.c.b16 %v615, %v611
    %v716 = vpack.c.b16 %v616, %v612
    %v717 = vpack.c.b16 %v621, %v617
    %v718 = vpack.c.b16 %v622, %v618
    %v719 = vpack.c.b16 %v623, %v619
    %v720 = vpack.c.b16 %v624, %v620
    %v721 = vpack.c.b16 %v629, %v625
    %v722 = vpack.c.b16 %v630, %v626
    %v723 = vpack.c.b16 %v631, %v627
    %v724 = vpack.c.b16 %v632, %v628
    %v725 = vpack.c.b16 %v637, %v633
    %v726 = vpack.c.b16 %v638, %v634
    %v727 = vpack.c.b16 %v639, %v635
    %v728 = vpack.c.b16 %v640, %v636
    %v729 = vpack.c.b16 %v645, %v641
    %v730 = vpack.c.b16 %v646, %v642
    %v731 = vpack.c.b16 %v647, %v643
    %v732 = vpack.c.b16 %v648, %v644
    %v733 = vpack.c.b16 %v653, %v649
    %v734 = vpack.c.b16 %v654, %v650
    %v735 = vpack.c.b16 %v655, %v651
    %v736 = vpack.c.b16 %v656, %v652
    %v737 = vpack.c.b16 %v661, %v657
    %v738 = vpack.c.b16 %v662, %v658
    %v739 = vpack.c.b16 %v663, %v659
    %v740 = vpack.c.b16 %v664, %v660
    %v741 = vpack.c.b16 %v669, %v665
    %v742 = vpack.c.b16 %v670, %v666
    %v743 = vpack.c.b16 %v671, %v667
    %v744 = vpack.c.b16 %v672, %v668
    %v745 = vpack.c.b16 %v677, %v673
    %v746 = vpack.c.b16 %v678, %v674
    %v747 = vpack.c.b16 %v679, %v675
    %v748 = vpack.c.b16 %v680, %v676
    %v749 = vpack.c.b16 %v685, %v681
    %v750 = vpack.c.b16 %v686, %v682
    %v751 = vpack.c.b16 %v687, %v683
    %v752 = vpack.c.b16 %v688, %v684
    %817 = vmatprep.subr.bf16.mxu0 %v690
    %818 = vmatpush1.bf16.msra.mxu0 %v689
    %819 = vmatprep.subr.bf16.mxu0 %v694
    %820 = vmatpush1.bf16.msra.mxu0 %v693
    %821 = vmatprep.subr.bf16.mxu0 %v698
    %822 = vmatpush1.bf16.msra.mxu0 %v697
    %823 = vmatprep.subr.bf16.mxu0 %v702
    %824 = vmatpush1.bf16.msra.mxu0 %v701
    %825 = vmatprep.subr.bf16.mxu0 %v706
    %826 = vmatpush1.bf16.msra.mxu0 %v705
    %827 = vmatprep.subr.bf16.mxu0 %v710
    %828 = vmatpush1.bf16.msra.mxu0 %v709
    %829 = vmatprep.subr.bf16.mxu0 %v714
    %830 = vmatpush1.bf16.msra.mxu0 %v713
    %831 = vmatprep.subr.bf16.mxu0 %v718
    %832 = vmatpush1.bf16.msra.mxu0 %v717
    %833 = vmatprep.subr.bf16.mxu0 %v722
    %834 = vmatpush1.bf16.msra.mxu0 %v721
    %835 = vmatprep.subr.bf16.mxu0 %v726
    %836 = vmatpush1.bf16.msra.mxu0 %v725
    %837 = vmatprep.subr.bf16.mxu0 %v730
    %838 = vmatpush1.bf16.msra.mxu0 %v729
    %839 = vmatprep.subr.bf16.mxu0 %v734
    %840 = vmatpush1.bf16.msra.mxu0 %v733
    %841 = vmatprep.subr.bf16.mxu0 %v738
    %842 = vmatpush1.bf16.msra.mxu0 %v737
    %843 = vmatprep.subr.bf16.mxu0 %v742
    %844 = vmatpush1.bf16.msra.mxu0 %v741
    %845 = vmatprep.subr.bf16.mxu0 %v746
    %846 = vmatpush1.bf16.msra.mxu0 %v745
    %847 = vmatprep.subr.bf16.mxu0 %v750
    %848 = vmatpush1.bf16.msra.mxu0 %v749
    %849 = vmatprep.mubr.bf16.mxu0 %v410
    %850 = vmatmul.mubr.bf16.gmra.mrb[0].mxu0 %v409
    %v851 = vpop.f32.mrb[0].mxu0
    %v852 = vadd.f32 %v480, %v851
    %v853 = vpop.f32.mrb[0].mxu0
    %v854 = vadd.f32 %v484, %v853
    %v855 = vpop.f32.mrb[0].mxu0
    %v856 = vpop.f32.mrb[0].mxu0
    %857 = vdwg.mxu0
    %858 = vmatprep.subr.bf16.mxu0 %v692
    %859 = vmatpush1.bf16.msra.mxu0 %v691
    %860 = vmatprep.subr.bf16.mxu0 %v696
    %861 = vmatpush1.bf16.msra.mxu0 %v695
    %862 = vmatprep.subr.bf16.mxu0 %v700
    %863 = vmatpush1.bf16.msra.mxu0 %v699
    %864 = vmatprep.subr.bf16.mxu0 %v704
    %865 = vmatpush1.bf16.msra.mxu0 %v703
    %866 = vmatprep.subr.bf16.mxu0 %v708
    %867 = vmatpush1.bf16.msra.mxu0 %v707
    %868 = vmatprep.subr.bf16.mxu0 %v712
    %869 = vmatpush1.bf16.msra.mxu0 %v711
    %870 = vmatprep.subr.bf16.mxu0 %v716
    %871 = vmatpush1.bf16.msra.mxu0 %v715
    %872 = vmatprep.subr.bf16.mxu0 %v720
    %873 = vmatpush1.bf16.msra.mxu0 %v719
    %874 = vmatprep.subr.bf16.mxu0 %v724
    %875 = vmatpush1.bf16.msra.mxu0 %v723
    %876 = vmatprep.subr.bf16.mxu0 %v728
    %877 = vmatpush1.bf16.msra.mxu0 %v727
    %878 = vmatprep.subr.bf16.mxu0 %v732
    %879 = vmatpush1.bf16.msra.mxu0 %v731
    %880 = vmatprep.subr.bf16.mxu0 %v736
    %881 = vmatpush1.bf16.msra.mxu0 %v735
    %882 = vmatprep.subr.bf16.mxu0 %v740
    %883 = vmatpush1.bf16.msra.mxu0 %v739
    %884 = vmatprep.subr.bf16.mxu0 %v744
    %885 = vmatpush1.bf16.msra.mxu0 %v743
    %886 = vmatprep.subr.bf16.mxu0 %v748
    %887 = vmatpush1.bf16.msra.mxu0 %v747
    %888 = vmatprep.subr.bf16.mxu0 %v752
    %889 = vmatpush1.bf16.msra.mxu0 %v751
    %890 = vmatprep.mubr.bf16.mxu0 %v410
    %891 = vmatmul.mubr.bf16.gmra.mrb[0].mxu0 %v409
    %v892 = vpop.f32.mrb[0].mxu0
    %v893 = vadd.f32 %v488, %v892
    %v894 = vpop.f32.mrb[0].mxu0
    %v895 = vadd.f32 %v492, %v894
    %v896 = vpop.f32.mrb[0].mxu0
    %v897 = vpop.f32.mrb[0].mxu0
    %898 = vdwg.mxu0
    %v899 = vmax.f32 %v852, 0.0
    %v900 = vmax.f32 %v854, 0.0
    %v901 = vmax.f32 %v893, 0.0
    %v902 = vmax.f32 %v895, 0.0
    %v903 = vpack.c.bf16 %v899, %v899
    %v904 = vpack.c.bf16 %v900, %v900
    %v905 = vpack.c.bf16 %v901, %v901
    %v906 = vpack.c.bf16 %v902, %v902
    %v907 = vld [vmem:[#allocation7] sm:$0xff]
    %v908 = vld [vmem:[#allocation7 + $0x8] sm:$0xff]
    %v909 = vld [vmem:[#allocation7 + $0x10] sm:$0xff]
    %v910 = vld [vmem:[#allocation7 + $0x18] sm:$0xff]
    %v911 = vld [vmem:[#allocation7 + $0x20] sm:$0xff]
    %v912 = vld [vmem:[#allocation7 + $0x28] sm:$0xff]
    %v913 = vld [vmem:[#allocation7 + $0x30] sm:$0xff]
    %v914 = vld [vmem:[#allocation7 + $0x38] sm:$0xff]
    %v915 = vld [vmem:[#allocation7 + $0x40] sm:$0xff]
    %v916 = vld [vmem:[#allocation7 + $0x48] sm:$0xff]
    %v917 = vld [vmem:[#allocation7 + $0x50] sm:$0xff]
    %v918 = vld [vmem:[#allocation7 + $0x58] sm:$0xff]
    %v919 = vld [vmem:[#allocation7 + $0x60] sm:$0xff]
    %v920 = vld [vmem:[#allocation7 + $0x68] sm:$0xff]
    %v921 = vld [vmem:[#allocation7 + $0x70] sm:$0xff]
    %v922 = vld [vmem:[#allocation7 + $0x78] sm:$0xff]
    %v923 = vld [vmem:[#allocation7 + $0x80] sm:$0xff]
    %v924 = vld [vmem:[#allocation7 + $0x88] sm:$0xff]
    %v925 = vld [vmem:[#allocation7 + $0x90] sm:$0xff]
    %v926 = vld [vmem:[#allocation7 + $0x98] sm:$0xff]
    %v927 = vld [vmem:[#allocation7 + $0xa0] sm:$0xff]
    %v928 = vld [vmem:[#allocation7 + $0xa8] sm:$0xff]
    %v929 = vld [vmem:[#allocation7 + $0xb0] sm:$0xff]
    %v930 = vld [vmem:[#allocation7 + $0xb8] sm:$0xff]
    %v931 = vld [vmem:[#allocation7 + $0xc0] sm:$0xff]
    %v932 = vld [vmem:[#allocation7 + $0xc8] sm:$0xff]
    %v933 = vld [vmem:[#allocation7 + $0xd0] sm:$0xff]
    %v934 = vld [vmem:[#allocation7 + $0xd8] sm:$0xff]
    %v935 = vld [vmem:[#allocation7 + $0xe0] sm:$0xff]
    %v936 = vld [vmem:[#allocation7 + $0xe8] sm:$0xff]
    %v937 = vld [vmem:[#allocation7 + $0xf0] sm:$0xff]
    %v938 = vld [vmem:[#allocation7 + $0xf8] sm:$0xff]
    %v939 = vld [vmem:[#allocation7 + $0x100] sm:$0xff]
    %v940 = vld [vmem:[#allocation7 + $0x108] sm:$0xff]
    %v941 = vld [vmem:[#allocation7 + $0x110] sm:$0xff]
    %v942 = vld [vmem:[#allocation7 + $0x118] sm:$0xff]
    %v943 = vld [vmem:[#allocation7 + $0x120] sm:$0xff]
    %v944 = vld [vmem:[#allocation7 + $0x128] sm:$0xff]
    %v945 = vld [vmem:[#allocation7 + $0x130] sm:$0xff]
    %v946 = vld [vmem:[#allocation7 + $0x138] sm:$0xff]
    %v947 = vld [vmem:[#allocation7 + $0x140] sm:$0xff]
    %v948 = vld [vmem:[#allocation7 + $0x148] sm:$0xff]
    %v949 = vld [vmem:[#allocation7 + $0x150] sm:$0xff]
    %v950 = vld [vmem:[#allocation7 + $0x158] sm:$0xff]
    %v951 = vld [vmem:[#allocation7 + $0x160] sm:$0xff]
    %v952 = vld [vmem:[#allocation7 + $0x168] sm:$0xff]
    %v953 = vld [vmem:[#allocation7 + $0x170] sm:$0xff]
    %v954 = vld [vmem:[#allocation7 + $0x178] sm:$0xff]
    %v955 = vld [vmem:[#allocation7 + $0x180] sm:$0xff]
    %v956 = vld [vmem:[#allocation7 + $0x188] sm:$0xff]
    %v957 = vld [vmem:[#allocation7 + $0x190] sm:$0xff]
    %v958 = vld [vmem:[#allocation7 + $0x198] sm:$0xff]
    %v959 = vld [vmem:[#allocation7 + $0x1a0] sm:$0xff]
    %v960 = vld [vmem:[#allocation7 + $0x1a8] sm:$0xff]
    %v961 = vld [vmem:[#allocation7 + $0x1b0] sm:$0xff]
    %v962 = vld [vmem:[#allocation7 + $0x1b8] sm:$0xff]
    %v963 = vld [vmem:[#allocation7 + $0x1c0] sm:$0xff]
    %v964 = vld [vmem:[#allocation7 + $0x1c8] sm:$0xff]
    %v965 = vld [vmem:[#allocation7 + $0x1d0] sm:$0xff]
    %v966 = vld [vmem:[#allocation7 + $0x1d8] sm:$0xff]
    %v967 = vld [vmem:[#allocation7 + $0x1e0] sm:$0xff]
    %v968 = vld [vmem:[#allocation7 + $0x1e8] sm:$0xff]
    %v969 = vld [vmem:[#allocation7 + $0x1f0] sm:$0xff]
    %v970 = vld [vmem:[#allocation7 + $0x1f8] sm:$0xff]
    %v971 = vld [vmem:[%s10] sm:$0x3]
    %v973 = vlaneseq
    %v974 = vshrl.u32 %v973, 7
    %v975 = vsub.s32 0, %v974
    %v976 = vrot.slane %v971, %v975
    %v977 = vlaneseq
    %v978 = vshrl.u32 %v977, 7
    %v979 = vsub.s32 1, %v978
    %v980 = vrot.slane %v971, %v979
    %v1047 = vunpack.c.l.b16 %v907
    %v1048 = vunpack.c.h.b16 %v907
    %v1049 = vunpack.c.l.b16 %v908
    %v1050 = vunpack.c.h.b16 %v908
    %v1051 = vunpack.c.l.b16 %v909
    %v1052 = vunpack.c.h.b16 %v909
    %v1053 = vunpack.c.l.b16 %v910
    %v1054 = vunpack.c.h.b16 %v910
    %v1055 = vunpack.c.l.b16 %v911
    %v1056 = vunpack.c.h.b16 %v911
    %v1057 = vunpack.c.l.b16 %v912
    %v1058 = vunpack.c.h.b16 %v912
    %v1059 = vunpack.c.l.b16 %v913
    %v1060 = vunpack.c.h.b16 %v913
    %v1061 = vunpack.c.l.b16 %v914
    %v1062 = vunpack.c.h.b16 %v914
    %v1063 = vunpack.c.l.b16 %v915
    %v1064 = vunpack.c.h.b16 %v915
    %v1065 = vunpack.c.l.b16 %v916
    %v1066 = vunpack.c.h.b16 %v916
    %v1067 = vunpack.c.l.b16 %v917
    %v1068 = vunpack.c.h.b16 %v917
    %v1069 = vunpack.c.l.b16 %v918
    %v1070 = vunpack.c.h.b16 %v918
    %v1071 = vunpack.c.l.b16 %v919
    %v1072 = vunpack.c.h.b16 %v919
    %v1073 = vunpack.c.l.b16 %v920
    %v1074 = vunpack.c.h.b16 %v920
    %v1075 = vunpack.c.l.b16 %v921
    %v1076 = vunpack.c.h.b16 %v921
    %v1077 = vunpack.c.l.b16 %v922
    %v1078 = vunpack.c.h.b16 %v922
    %v1079 = vunpack.c.l.b16 %v923
    %v1080 = vunpack.c.h.b16 %v923
    %v1081 = vunpack.c.l.b16 %v924
    %v1082 = vunpack.c.h.b16 %v924
    %v1083 = vunpack.c.l.b16 %v925
    %v1084 = vunpack.c.h.b16 %v925
    %v1085 = vunpack.c.l.b16 %v926
    %v1086 = vunpack.c.h.b16 %v926
    %v1087 = vunpack.c.l.b16 %v927
    %v1088 = vunpack.c.h.b16 %v927
    %v1089 = vunpack.c.l.b16 %v928
    %v1090 = vunpack.c.h.b16 %v928
    %v1091 = vunpack.c.l.b16 %v929
    %v1092 = vunpack.c.h.b16 %v929
    %v1093 = vunpack.c.l.b16 %v930
    %v1094 = vunpack.c.h.b16 %v930
    %v1095 = vunpack.c.l.b16 %v931
    %v1096 = vunpack.c.h.b16 %v931
    %v1097 = vunpack.c.l.b16 %v932
    %v1098 = vunpack.c.h.b16 %v932
    %v1099 = vunpack.c.l.b16 %v933
    %v1100 = vunpack.c.h.b16 %v933
    %v1101 = vunpack.c.l.b16 %v934
    %v1102 = vunpack.c.h.b16 %v934
    %v1103 = vunpack.c.l.b16 %v935
    %v1104 = vunpack.c.h.b16 %v935
    %v1105 = vunpack.c.l.b16 %v936
    %v1106 = vunpack.c.h.b16 %v936
    %v1107 = vunpack.c.l.b16 %v937
    %v1108 = vunpack.c.h.b16 %v937
    %v1109 = vunpack.c.l.b16 %v938
    %v1110 = vunpack.c.h.b16 %v938
    %v1111 = vunpack.c.l.b16 %v939
    %v1112 = vunpack.c.h.b16 %v939
    %v1113 = vunpack.c.l.b16 %v940
    %v1114 = vunpack.c.h.b16 %v940
    %v1115 = vunpack.c.l.b16 %v941
    %v1116 = vunpack.c.h.b16 %v941
    %v1117 = vunpack.c.l.b16 %v942
    %v1118 = vunpack.c.h.b16 %v942
    %v1119 = vunpack.c.l.b16 %v943
    %v1120 = vunpack.c.h.b16 %v943
    %v1121 = vunpack.c.l.b16 %v944
    %v1122 = vunpack.c.h.b16 %v944
    %v1123 = vunpack.c.l.b16 %v945
    %v1124 = vunpack.c.h.b16 %v945
    %v1125 = vunpack.c.l.b16 %v946
    %v1126 = vunpack.c.h.b16 %v946
    %v1127 = vunpack.c.l.b16 %v947
    %v1128 = vunpack.c.h.b16 %v947
    %v1129 = vunpack.c.l.b16 %v948
    %v1130 = vunpack.c.h.b16 %v948
    %v1131 = vunpack.c.l.b16 %v949
    %v1132 = vunpack.c.h.b16 %v949
    %v1133 = vunpack.c.l.b16 %v950
    %v1134 = vunpack.c.h.b16 %v950
    %v1135 = vunpack.c.l.b16 %v951
    %v1136 = vunpack.c.h.b16 %v951
    %v1137 = vunpack.c.l.b16 %v952
    %v1138 = vunpack.c.h.b16 %v952
    %v1139 = vunpack.c.l.b16 %v953
    %v1140 = vunpack.c.h.b16 %v953
    %v1141 = vunpack.c.l.b16 %v954
    %v1142 = vunpack.c.h.b16 %v954
    %v1143 = vunpack.c.l.b16 %v955
    %v1144 = vunpack.c.h.b16 %v955
    %v1145 = vunpack.c.l.b16 %v956
    %v1146 = vunpack.c.h.b16 %v956
    %v1147 = vunpack.c.l.b16 %v957
    %v1148 = vunpack.c.h.b16 %v957
    %v1149 = vunpack.c.l.b16 %v958
    %v1150 = vunpack.c.h.b16 %v958
    %v1151 = vunpack.c.l.b16 %v959
    %v1152 = vunpack.c.h.b16 %v959
    %v1153 = vunpack.c.l.b16 %v960
    %v1154 = vunpack.c.h.b16 %v960
    %v1155 = vunpack.c.l.b16 %v961
    %v1156 = vunpack.c.h.b16 %v961
    %v1157 = vunpack.c.l.b16 %v962
    %v1158 = vunpack.c.h.b16 %v962
    %v1159 = vunpack.c.l.b16 %v963
    %v1160 = vunpack.c.h.b16 %v963
    %v1161 = vunpack.c.l.b16 %v964
    %v1162 = vunpack.c.h.b16 %v964
    %v1163 = vunpack.c.l.b16 %v965
    %v1164 = vunpack.c.h.b16 %v965
    %v1165 = vunpack.c.l.b16 %v966
    %v1166 = vunpack.c.h.b16 %v966
    %v1167 = vunpack.c.l.b16 %v967
    %v1168 = vunpack.c.h.b16 %v967
    %v1169 = vunpack.c.l.b16 %v968
    %v1170 = vunpack.c.h.b16 %v968
    %v1171 = vunpack.c.l.b16 %v969
    %v1172 = vunpack.c.h.b16 %v969
    %v1173 = vunpack.c.l.b16 %v970
    %v1174 = vunpack.c.h.b16 %v970
    %v1175 = vpack.c.b16 %v1049, %v1047
    %v1176 = vpack.c.b16 %v1050, %v1048
    %v1177 = vpack.c.b16 %v1053, %v1051
    %v1178 = vpack.c.b16 %v1054, %v1052
    %v1179 = vpack.c.b16 %v1057, %v1055
    %v1180 = vpack.c.b16 %v1058, %v1056
    %v1181 = vpack.c.b16 %v1061, %v1059
    %v1182 = vpack.c.b16 %v1062, %v1060
    %v1183 = vpack.c.b16 %v1065, %v1063
    %v1184 = vpack.c.b16 %v1066, %v1064
    %v1185 = vpack.c.b16 %v1069, %v1067
    %v1186 = vpack.c.b16 %v1070, %v1068
    %v1187 = vpack.c.b16 %v1073, %v1071
    %v1188 = vpack.c.b16 %v1074, %v1072
    %v1189 = vpack.c.b16 %v1077, %v1075
    %v1190 = vpack.c.b16 %v1078, %v1076
    %v1191 = vpack.c.b16 %v1081, %v1079
    %v1192 = vpack.c.b16 %v1082, %v1080
    %v1193 = vpack.c.b16 %v1085, %v1083
    %v1194 = vpack.c.b16 %v1086, %v1084
    %v1195 = vpack.c.b16 %v1089, %v1087
    %v1196 = vpack.c.b16 %v1090, %v1088
    %v1197 = vpack.c.b16 %v1093, %v1091
    %v1198 = vpack.c.b16 %v1094, %v1092
    %v1199 = vpack.c.b16 %v1097, %v1095
    %v1200 = vpack.c.b16 %v1098, %v1096
    %v1201 = vpack.c.b16 %v1101, %v1099
    %v1202 = vpack.c.b16 %v1102, %v1100
    %v1203 = vpack.c.b16 %v1105, %v1103
    %v1204 = vpack.c.b16 %v1106, %v1104
    %v1205 = vpack.c.b16 %v1109, %v1107
    %v1206 = vpack.c.b16 %v1110, %v1108
    %v1207 = vpack.c.b16 %v1113, %v1111
    %v1208 = vpack.c.b16 %v1114, %v1112
    %v1209 = vpack.c.b16 %v1117, %v1115
    %v1210 = vpack.c.b16 %v1118, %v1116
    %v1211 = vpack.c.b16 %v1121, %v1119
    %v1212 = vpack.c.b16 %v1122, %v1120
    %v1213 = vpack.c.b16 %v1125, %v1123
    %v1214 = vpack.c.b16 %v1126, %v1124
    %v1215 = vpack.c.b16 %v1129, %v1127
    %v1216 = vpack.c.b16 %v1130, %v1128
    %v1217 = vpack.c.b16 %v1133, %v1131
    %v1218 = vpack.c.b16 %v1134, %v1132
    %v1219 = vpack.c.b16 %v1137, %v1135
    %v1220 = vpack.c.b16 %v1138, %v1136
    %v1221 = vpack.c.b16 %v1141, %v1139
    %v1222 = vpack.c.b16 %v1142, %v1140
    %v1223 = vpack.c.b16 %v1145, %v1143
    %v1224 = vpack.c.b16 %v1146, %v1144
    %v1225 = vpack.c.b16 %v1149, %v1147
    %v1226 = vpack.c.b16 %v1150, %v1148
    %v1227 = vpack.c.b16 %v1153, %v1151
    %v1228 = vpack.c.b16 %v1154, %v1152
    %v1229 = vpack.c.b16 %v1157, %v1155
    %v1230 = vpack.c.b16 %v1158, %v1156
    %v1231 = vpack.c.b16 %v1161, %v1159
    %v1232 = vpack.c.b16 %v1162, %v1160
    %v1233 = vpack.c.b16 %v1165, %v1163
    %v1234 = vpack.c.b16 %v1166, %v1164
    %v1235 = vpack.c.b16 %v1169, %v1167
    %v1236 = vpack.c.b16 %v1170, %v1168
    %v1237 = vpack.c.b16 %v1173, %v1171
    %v1238 = vpack.c.b16 %v1174, %v1172
    %1303 = vmatprep.subr.bf16.mxu0 %v1176
    %1304 = vmatpush1.bf16.msra.mxu0 %v1175
    %1305 = vmatprep.subr.bf16.mxu0 %v1178
    %1306 = vmatpush1.bf16.msra.mxu0 %v1177
    %1307 = vmatprep.subr.bf16.mxu0 %v1180
    %1308 = vmatpush1.bf16.msra.mxu0 %v1179
    %1309 = vmatprep.subr.bf16.mxu0 %v1182
    %1310 = vmatpush1.bf16.msra.mxu0 %v1181
    %1311 = vmatprep.subr.bf16.mxu0 %v1184
    %1312 = vmatpush1.bf16.msra.mxu0 %v1183
    %1313 = vmatprep.subr.bf16.mxu0 %v1186
    %1314 = vmatpush1.bf16.msra.mxu0 %v1185
    %1315 = vmatprep.subr.bf16.mxu0 %v1188
    %1316 = vmatpush1.bf16.msra.mxu0 %v1187
    %1317 = vmatprep.subr.bf16.mxu0 %v1190
    %1318 = vmatpush1.bf16.msra.mxu0 %v1189
    %1319 = vmatprep.subr.bf16.mxu0 %v1192
    %1320 = vmatpush1.bf16.msra.mxu0 %v1191
    %1321 = vmatprep.subr.bf16.mxu0 %v1194
    %1322 = vmatpush1.bf16.msra.mxu0 %v1193
    %1323 = vmatprep.subr.bf16.mxu0 %v1196
    %1324 = vmatpush1.bf16.msra.mxu0 %v1195
    %1325 = vmatprep.subr.bf16.mxu0 %v1198
    %1326 = vmatpush1.bf16.msra.mxu0 %v1197
    %1327 = vmatprep.subr.bf16.mxu0 %v1200
    %1328 = vmatpush1.bf16.msra.mxu0 %v1199
    %1329 = vmatprep.subr.bf16.mxu0 %v1202
    %1330 = vmatpush1.bf16.msra.mxu0 %v1201
    %1331 = vmatprep.subr.bf16.mxu0 %v1204
    %1332 = vmatpush1.bf16.msra.mxu0 %v1203
    %1333 = vmatprep.subr.bf16.mxu0 %v1206
    %1334 = vmatpush1.bf16.msra.mxu0 %v1205
    %1335 = vmatprep.mubr.bf16.mxu0 %v904
    %1336 = vmatmul.mubr.bf16.gmra.mrb[0].mxu0 %v903
    %v1337 = vpop.f32.mrb[0].mxu0
    %v1338 = vadd.f32 %v976, %v1337
    %v1339 = vpop.f32.mrb[0].mxu0
    %v1340 = vadd.f32 %v980, %v1339
    %v1341 = vpop.f32.mrb[0].mxu0
    %v1342 = vpop.f32.mrb[0].mxu0
    %1343 = vdwg.mxu0
    %1344 = vmatprep.subr.bf16.mxu0 %v1208
    %1345 = vmatpush1.bf16.msra.mxu0 %v1207
    %1346 = vmatprep.subr.bf16.mxu0 %v1210
    %1347 = vmatpush1.bf16.msra.mxu0 %v1209
    %1348 = vmatprep.subr.bf16.mxu0 %v1212
    %1349 = vmatpush1.bf16.msra.mxu0 %v1211
    %1350 = vmatprep.subr.bf16.mxu0 %v1214
    %1351 = vmatpush1.bf16.msra.mxu0 %v1213
    %1352 = vmatprep.subr.bf16.mxu0 %v1216
    %1353 = vmatpush1.bf16.msra.mxu0 %v1215
    %1354 = vmatprep.subr.bf16.mxu0 %v1218
    %1355 = vmatpush1.bf16.msra.mxu0 %v1217
    %1356 = vmatprep.subr.bf16.mxu0 %v1220
    %1357 = vmatpush1.bf16.msra.mxu0 %v1219
    %1358 = vmatprep.subr.bf16.mxu0 %v1222
    %1359 = vmatpush1.bf16.msra.mxu0 %v1221
    %1360 = vmatprep.subr.bf16.mxu0 %v1224
    %1361 = vmatpush1.bf16.msra.mxu0 %v1223
    %1362 = vmatprep.subr.bf16.mxu0 %v1226
    %1363 = vmatpush1.bf16.msra.mxu0 %v1225
    %1364 = vmatprep.subr.bf16.mxu0 %v1228
    %1365 = vmatpush1.bf16.msra.mxu0 %v1227
    %1366 = vmatprep.subr.bf16.mxu0 %v1230
    %1367 = vmatpush1.bf16.msra.mxu0 %v1229
    %1368 = vmatprep.subr.bf16.mxu0 %v1232
    %1369 = vmatpush1.bf16.msra.mxu0 %v1231
    %1370 = vmatprep.subr.bf16.mxu0 %v1234
    %1371 = vmatpush1.bf16.msra.mxu0 %v1233
    %1372 = vmatprep.subr.bf16.mxu0 %v1236
    %1373 = vmatpush1.bf16.msra.mxu0 %v1235
    %1374 = vmatprep.subr.bf16.mxu0 %v1238
    %1375 = vmatpush1.bf16.msra.mxu0 %v1237
    %1376 = vmatprep.mubr.bf16.mxu0 %v906
    %1377 = vmatmul.mubr.bf16.gmra.mrb[0].mxu0 %v905
    %v1378 = vpop.f32.mrb[0].mxu0
    %v1379 = vadd.f32 %v1338, %v1378
    %v1380 = vpop.f32.mrb[0].mxu0
    %v1381 = vadd.f32 %v1340, %v1380
    %v1382 = vpop.f32.mrb[0].mxu0
    %v1383 = vpop.f32.mrb[0].mxu0
    %1384 = vdwg.mxu0
    %1385 = vst [vmem:[%s13] sm:$0xff] %v1379
    %1386 = vst [vmem:[%s13 + $0x8] sm:$0xff] %v1381
    %v1387 = vld [vmem:[#allocation9] sm:$0xff]
    %v1388 = vld [vmem:[#allocation9 + $0x8] sm:$0xff]
    %v1389 = vld [vmem:[#allocation9 + $0x10] sm:$0xff]
    %v1390 = vld [vmem:[#allocation9 + $0x18] sm:$0xff]
    %v1391 = vld [vmem:[#allocation9 + $0x20] sm:$0xff]
    %v1392 = vld [vmem:[#allocation9 + $0x28] sm:$0xff]
    %v1393 = vld [vmem:[#allocation9 + $0x30] sm:$0xff]
    %v1394 = vld [vmem:[#allocation9 + $0x38] sm:$0xff]
    %v1395 = vld [vmem:[#allocation9 + $0x40] sm:$0xff]
    %v1396 = vld [vmem:[#allocation9 + $0x48] sm:$0xff]
    %v1397 = vld [vmem:[#allocation9 + $0x50] sm:$0xff]
    %v1398 = vld [vmem:[#allocation9 + $0x58] sm:$0xff]
    %v1399 = vld [vmem:[#allocation9 + $0x60] sm:$0xff]
    %v1400 = vld [vmem:[#allocation9 + $0x68] sm:$0xff]
    %v1401 = vld [vmem:[#allocation9 + $0x70] sm:$0xff]
    %v1402 = vld [vmem:[#allocation9 + $0x78] sm:$0xff]
    %v1403 = vld [vmem:[#allocation9 + $0x80] sm:$0xff]
    %v1404 = vld [vmem:[#allocation9 + $0x88] sm:$0xff]
    %v1405 = vld [vmem:[#allocation9 + $0x90] sm:$0xff]
    %v1406 = vld [vmem:[#allocation9 + $0x98] sm:$0xff]
    %v1407 = vld [vmem:[#allocation9 + $0xa0] sm:$0xff]
    %v1408 = vld [vmem:[#allocation9 + $0xa8] sm:$0xff]
    %v1409 = vld [vmem:[#allocation9 + $0xb0] sm:$0xff]
    %v1410 = vld [vmem:[#allocation9 + $0xb8] sm:$0xff]
    %v1411 = vld [vmem:[#allocation9 + $0xc0] sm:$0xff]
    %v1412 = vld [vmem:[#allocation9 + $0xc8] sm:$0xff]
    %v1413 = vld [vmem:[#allocation9 + $0xd0] sm:$0xff]
    %v1414 = vld [vmem:[#allocation9 + $0xd8] sm:$0xff]
    %v1415 = vld [vmem:[#allocation9 + $0xe0] sm:$0xff]
    %v1416 = vld [vmem:[#allocation9 + $0xe8] sm:$0xff]
    %v1417 = vld [vmem:[#allocation9 + $0xf0] sm:$0xff]
    %v1418 = vld [vmem:[#allocation9 + $0xf8] sm:$0xff]
    %v1419 = vld [vmem:[#allocation9 + $0x100] sm:$0xff]
    %v1420 = vld [vmem:[#allocation9 + $0x108] sm:$0xff]
    %v1421 = vld [vmem:[#allocation9 + $0x110] sm:$0xff]
    %v1422 = vld [vmem:[#allocation9 + $0x118] sm:$0xff]
    %v1423 = vld [vmem:[#allocation9 + $0x120] sm:$0xff]
    %v1424 = vld [vmem:[#allocation9 + $0x128] sm:$0xff]
    %v1425 = vld [vmem:[#allocation9 + $0x130] sm:$0xff]
    %v1426 = vld [vmem:[#allocation9 + $0x138] sm:$0xff]
    %v1427 = vld [vmem:[#allocation9 + $0x140] sm:$0xff]
    %v1428 = vld [vmem:[#allocation9 + $0x148] sm:$0xff]
    %v1429 = vld [vmem:[#allocation9 + $0x150] sm:$0xff]
    %v1430 = vld [vmem:[#allocation9 + $0x158] sm:$0xff]
    %v1431 = vld [vmem:[#allocation9 + $0x160] sm:$0xff]
    %v1432 = vld [vmem:[#allocation9 + $0x168] sm:$0xff]
    %v1433 = vld [vmem:[#allocation9 + $0x170] sm:$0xff]
    %v1434 = vld [vmem:[#allocation9 + $0x178] sm:$0xff]
    %v1435 = vld [vmem:[#allocation9 + $0x180] sm:$0xff]
    %v1436 = vld [vmem:[#allocation9 + $0x188] sm:$0xff]
    %v1437 = vld [vmem:[#allocation9 + $0x190] sm:$0xff]
    %v1438 = vld [vmem:[#allocation9 + $0x198] sm:$0xff]
    %v1439 = vld [vmem:[#allocation9 + $0x1a0] sm:$0xff]
    %v1440 = vld [vmem:[#allocation9 + $0x1a8] sm:$0xff]
    %v1441 = vld [vmem:[#allocation9 + $0x1b0] sm:$0xff]
    %v1442 = vld [vmem:[#allocation9 + $0x1b8] sm:$0xff]
    %v1443 = vld [vmem:[#allocation9 + $0x1c0] sm:$0xff]
    %v1444 = vld [vmem:[#allocation9 + $0x1c8] sm:$0xff]
    %v1445 = vld [vmem:[#allocation9 + $0x1d0] sm:$0xff]
    %v1446 = vld [vmem:[#allocation9 + $0x1d8] sm:$0xff]
    %v1447 = vld [vmem:[#allocation9 + $0x1e0] sm:$0xff]
    %v1448 = vld [vmem:[#allocation9 + $0x1e8] sm:$0xff]
    %v1449 = vld [vmem:[#allocation9 + $0x1f0] sm:$0xff]
    %v1450 = vld [vmem:[#allocation9 + $0x1f8] sm:$0xff]
    %v1451 = vld [vmem:[%s12] sm:$0x3]
    %v1453 = vlaneseq
    %v1454 = vshrl.u32 %v1453, 7
    %v1455 = vsub.s32 0, %v1454
    %v1456 = vrot.slane %v1451, %v1455
    %v1457 = vlaneseq
    %v1458 = vshrl.u32 %v1457, 7
    %v1459 = vsub.s32 1, %v1458
    %v1460 = vrot.slane %v1451, %v1459
    %v1527 = vunpack.c.l.b16 %v1387
    %v1528 = vunpack.c.h.b16 %v1387
    %v1529 = vunpack.c.l.b16 %v1388
    %v1530 = vunpack.c.h.b16 %v1388
    %v1531 = vunpack.c.l.b16 %v1389
    %v1532 = vunpack.c.h.b16 %v1389
    %v1533 = vunpack.c.l.b16 %v1390
    %v1534 = vunpack.c.h.b16 %v1390
    %v1535 = vunpack.c.l.b16 %v1391
    %v1536 = vunpack.c.h.b16 %v1391
    %v1537 = vunpack.c.l.b16 %v1392
    %v1538 = vunpack.c.h.b16 %v1392
    %v1539 = vunpack.c.l.b16 %v1393
    %v1540 = vunpack.c.h.b16 %v1393
    %v1541 = vunpack.c.l.b16 %v1394
    %v1542 = vunpack.c.h.b16 %v1394
    %v1543 = vunpack.c.l.b16 %v1395
    %v1544 = vunpack.c.h.b16 %v1395
    %v1545 = vunpack.c.l.b16 %v1396
    %v1546 = vunpack.c.h.b16 %v1396
    %v1547 = vunpack.c.l.b16 %v1397
    %v1548 = vunpack.c.h.b16 %v1397
    %v1549 = vunpack.c.l.b16 %v1398
    %v1550 = vunpack.c.h.b16 %v1398
    %v1551 = vunpack.c.l.b16 %v1399
    %v1552 = vunpack.c.h.b16 %v1399
    %v1553 = vunpack.c.l.b16 %v1400
    %v1554 = vunpack.c.h.b16 %v1400
    %v1555 = vunpack.c.l.b16 %v1401
    %v1556 = vunpack.c.h.b16 %v1401
    %v1557 = vunpack.c.l.b16 %v1402
    %v1558 = vunpack.c.h.b16 %v1402
    %v1559 = vunpack.c.l.b16 %v1403
    %v1560 = vunpack.c.h.b16 %v1403
    %v1561 = vunpack.c.l.b16 %v1404
    %v1562 = vunpack.c.h.b16 %v1404
    %v1563 = vunpack.c.l.b16 %v1405
    %v1564 = vunpack.c.h.b16 %v1405
    %v1565 = vunpack.c.l.b16 %v1406
    %v1566 = vunpack.c.h.b16 %v1406
    %v1567 = vunpack.c.l.b16 %v1407
    %v1568 = vunpack.c.h.b16 %v1407
    %v1569 = vunpack.c.l.b16 %v1408
    %v1570 = vunpack.c.h.b16 %v1408
    %v1571 = vunpack.c.l.b16 %v1409
    %v1572 = vunpack.c.h.b16 %v1409
    %v1573 = vunpack.c.l.b16 %v1410
    %v1574 = vunpack.c.h.b16 %v1410
    %v1575 = vunpack.c.l.b16 %v1411
    %v1576 = vunpack.c.h.b16 %v1411
    %v1577 = vunpack.c.l.b16 %v1412
    %v1578 = vunpack.c.h.b16 %v1412
    %v1579 = vunpack.c.l.b16 %v1413
    %v1580 = vunpack.c.h.b16 %v1413
    %v1581 = vunpack.c.l.b16 %v1414
    %v1582 = vunpack.c.h.b16 %v1414
    %v1583 = vunpack.c.l.b16 %v1415
    %v1584 = vunpack.c.h.b16 %v1415
    %v1585 = vunpack.c.l.b16 %v1416
    %v1586 = vunpack.c.h.b16 %v1416
    %v1587 = vunpack.c.l.b16 %v1417
    %v1588 = vunpack.c.h.b16 %v1417
    %v1589 = vunpack.c.l.b16 %v1418
    %v1590 = vunpack.c.h.b16 %v1418
    %v1591 = vunpack.c.l.b16 %v1419
    %v1592 = vunpack.c.h.b16 %v1419
    %v1593 = vunpack.c.l.b16 %v1420
    %v1594 = vunpack.c.h.b16 %v1420
    %v1595 = vunpack.c.l.b16 %v1421
    %v1596 = vunpack.c.h.b16 %v1421
    %v1597 = vunpack.c.l.b16 %v1422
    %v1598 = vunpack.c.h.b16 %v1422
    %v1599 = vunpack.c.l.b16 %v1423
    %v1600 = vunpack.c.h.b16 %v1423
    %v1601 = vunpack.c.l.b16 %v1424
    %v1602 = vunpack.c.h.b16 %v1424
    %v1603 = vunpack.c.l.b16 %v1425
    %v1604 = vunpack.c.h.b16 %v1425
    %v1605 = vunpack.c.l.b16 %v1426
    %v1606 = vunpack.c.h.b16 %v1426
    %v1607 = vunpack.c.l.b16 %v1427
    %v1608 = vunpack.c.h.b16 %v1427
    %v1609 = vunpack.c.l.b16 %v1428
    %v1610 = vunpack.c.h.b16 %v1428
    %v1611 = vunpack.c.l.b16 %v1429
    %v1612 = vunpack.c.h.b16 %v1429
    %v1613 = vunpack.c.l.b16 %v1430
    %v1614 = vunpack.c.h.b16 %v1430
    %v1615 = vunpack.c.l.b16 %v1431
    %v1616 = vunpack.c.h.b16 %v1431
    %v1617 = vunpack.c.l.b16 %v1432
    %v1618 = vunpack.c.h.b16 %v1432
    %v1619 = vunpack.c.l.b16 %v1433
    %v1620 = vunpack.c.h.b16 %v1433
    %v1621 = vunpack.c.l.b16 %v1434
    %v1622 = vunpack.c.h.b16 %v1434
    %v1623 = vunpack.c.l.b16 %v1435
    %v1624 = vunpack.c.h.b16 %v1435
    %v1625 = vunpack.c.l.b16 %v1436
    %v1626 = vunpack.c.h.b16 %v1436
    %v1627 = vunpack.c.l.b16 %v1437
    %v1628 = vunpack.c.h.b16 %v1437
    %v1629 = vunpack.c.l.b16 %v1438
    %v1630 = vunpack.c.h.b16 %v1438
    %v1631 = vunpack.c.l.b16 %v1439
    %v1632 = vunpack.c.h.b16 %v1439
    %v1633 = vunpack.c.l.b16 %v1440
    %v1634 = vunpack.c.h.b16 %v1440
    %v1635 = vunpack.c.l.b16 %v1441
    %v1636 = vunpack.c.h.b16 %v1441
    %v1637 = vunpack.c.l.b16 %v1442
    %v1638 = vunpack.c.h.b16 %v1442
    %v1639 = vunpack.c.l.b16 %v1443
    %v1640 = vunpack.c.h.b16 %v1443
    %v1641 = vunpack.c.l.b16 %v1444
    %v1642 = vunpack.c.h.b16 %v1444
    %v1643 = vunpack.c.l.b16 %v1445
    %v1644 = vunpack.c.h.b16 %v1445
    %v1645 = vunpack.c.l.b16 %v1446
    %v1646 = vunpack.c.h.b16 %v1446
    %v1647 = vunpack.c.l.b16 %v1447
    %v1648 = vunpack.c.h.b16 %v1447
    %v1649 = vunpack.c.l.b16 %v1448
    %v1650 = vunpack.c.h.b16 %v1448
    %v1651 = vunpack.c.l.b16 %v1449
    %v1652 = vunpack.c.h.b16 %v1449
    %v1653 = vunpack.c.l.b16 %v1450
    %v1654 = vunpack.c.h.b16 %v1450
    %v1655 = vpack.c.b16 %v1529, %v1527
    %v1656 = vpack.c.b16 %v1530, %v1528
    %v1657 = vpack.c.b16 %v1533, %v1531
    %v1658 = vpack.c.b16 %v1534, %v1532
    %v1659 = vpack.c.b16 %v1537, %v1535
    %v1660 = vpack.c.b16 %v1538, %v1536
    %v1661 = vpack.c.b16 %v1541, %v1539
    %v1662 = vpack.c.b16 %v1542, %v1540
    %v1663 = vpack.c.b16 %v1545, %v1543
    %v1664 = vpack.c.b16 %v1546, %v1544
    %v1665 = vpack.c.b16 %v1549, %v1547
    %v1666 = vpack.c.b16 %v1550, %v1548
    %v1667 = vpack.c.b16 %v1553, %v1551
    %v1668 = vpack.c.b16 %v1554, %v1552
    %v1669 = vpack.c.b16 %v1557, %v1555
    %v1670 = vpack.c.b16 %v1558, %v1556
    %v1671 = vpack.c.b16 %v1561, %v1559
    %v1672 = vpack.c.b16 %v1562, %v1560
    %v1673 = vpack.c.b16 %v1565, %v1563
    %v1674 = vpack.c.b16 %v1566, %v1564
    %v1675 = vpack.c.b16 %v1569, %v1567
    %v1676 = vpack.c.b16 %v1570, %v1568
    %v1677 = vpack.c.b16 %v1573, %v1571
    %v1678 = vpack.c.b16 %v1574, %v1572
    %v1679 = vpack.c.b16 %v1577, %v1575
    %v1680 = vpack.c.b16 %v1578, %v1576
    %v1681 = vpack.c.b16 %v1581, %v1579
    %v1682 = vpack.c.b16 %v1582, %v1580
    %v1683 = vpack.c.b16 %v1585, %v1583
    %v1684 = vpack.c.b16 %v1586, %v1584
    %v1685 = vpack.c.b16 %v1589, %v1587
    %v1686 = vpack.c.b16 %v1590, %v1588
    %v1687 = vpack.c.b16 %v1593, %v1591
    %v1688 = vpack.c.b16 %v1594, %v1592
    %v1689 = vpack.c.b16 %v1597, %v1595
    %v1690 = vpack.c.b16 %v1598, %v1596
    %v1691 = vpack.c.b16 %v1601, %v1599
    %v1692 = vpack.c.b16 %v1602, %v1600
    %v1693 = vpack.c.b16 %v1605, %v1603
    %v1694 = vpack.c.b16 %v1606, %v1604
    %v1695 = vpack.c.b16 %v1609, %v1607
    %v1696 = vpack.c.b16 %v1610, %v1608
    %v1697 = vpack.c.b16 %v1613, %v1611
    %v1698 = vpack.c.b16 %v1614, %v1612
    %v1699 = vpack.c.b16 %v1617, %v1615
    %v1700 = vpack.c.b16 %v1618, %v1616
    %v1701 = vpack.c.b16 %v1621, %v1619
    %v1702 = vpack.c.b16 %v1622, %v1620
    %v1703 = vpack.c.b16 %v1625, %v1623
    %v1704 = vpack.c.b16 %v1626, %v1624
    %v1705 = vpack.c.b16 %v1629, %v1627
    %v1706 = vpack.c.b16 %v1630, %v1628
    %v1707 = vpack.c.b16 %v1633, %v1631
    %v1708 = vpack.c.b16 %v1634, %v1632
    %v1709 = vpack.c.b16 %v1637, %v1635
    %v1710 = vpack.c.b16 %v1638, %v1636
    %v1711 = vpack.c.b16 %v1641, %v1639
    %v1712 = vpack.c.b16 %v1642, %v1640
    %v1713 = vpack.c.b16 %v1645, %v1643
    %v1714 = vpack.c.b16 %v1646, %v1644
    %v1715 = vpack.c.b16 %v1649, %v1647
    %v1716 = vpack.c.b16 %v1650, %v1648
    %v1717 = vpack.c.b16 %v1653, %v1651
    %v1718 = vpack.c.b16 %v1654, %v1652
    %1783 = vmatprep.subr.bf16.mxu0 %v1656
    %1784 = vmatpush1.bf16.msra.mxu0 %v1655
    %1785 = vmatprep.subr.bf16.mxu0 %v1658
    %1786 = vmatpush1.bf16.msra.mxu0 %v1657
    %1787 = vmatprep.subr.bf16.mxu0 %v1660
    %1788 = vmatpush1.bf16.msra.mxu0 %v1659
    %1789 = vmatprep.subr.bf16.mxu0 %v1662
    %1790 = vmatpush1.bf16.msra.mxu0 %v1661
    %1791 = vmatprep.subr.bf16.mxu0 %v1664
    %1792 = vmatpush1.bf16.msra.mxu0 %v1663
    %1793 = vmatprep.subr.bf16.mxu0 %v1666
    %1794 = vmatpush1.bf16.msra.mxu0 %v1665
    %1795 = vmatprep.subr.bf16.mxu0 %v1668
    %1796 = vmatpush1.bf16.msra.mxu0 %v1667
    %1797 = vmatprep.subr.bf16.mxu0 %v1670
    %1798 = vmatpush1.bf16.msra.mxu0 %v1669
    %1799 = vmatprep.subr.bf16.mxu0 %v1672
    %1800 = vmatpush1.bf16.msra.mxu0 %v1671
    %1801 = vmatprep.subr.bf16.mxu0 %v1674
    %1802 = vmatpush1.bf16.msra.mxu0 %v1673
    %1803 = vmatprep.subr.bf16.mxu0 %v1676
    %1804 = vmatpush1.bf16.msra.mxu0 %v1675
    %1805 = vmatprep.subr.bf16.mxu0 %v1678
    %1806 = vmatpush1.bf16.msra.mxu0 %v1677
    %1807 = vmatprep.subr.bf16.mxu0 %v1680
    %1808 = vmatpush1.bf16.msra.mxu0 %v1679
    %1809 = vmatprep.subr.bf16.mxu0 %v1682
    %1810 = vmatpush1.bf16.msra.mxu0 %v1681
    %1811 = vmatprep.subr.bf16.mxu0 %v1684
    %1812 = vmatpush1.bf16.msra.mxu0 %v1683
    %1813 = vmatprep.subr.bf16.mxu0 %v1686
    %1814 = vmatpush1.bf16.msra.mxu0 %v1685
    %1815 = vmatprep.mubr.bf16.mxu0 %v904
    %1816 = vmatmul.mubr.bf16.gmra.mrb[0].mxu0 %v903
    %v1817 = vpop.f32.mrb[0].mxu0
    %v1818 = vadd.f32 %v1456, %v1817
    %v1819 = vpop.f32.mrb[0].mxu0
    %v1820 = vadd.f32 %v1460, %v1819
    %v1821 = vpop.f32.mrb[0].mxu0
    %v1822 = vpop.f32.mrb[0].mxu0
    %1823 = vdwg.mxu0
    %1824 = vmatprep.subr.bf16.mxu0 %v1688
    %1825 = vmatpush1.bf16.msra.mxu0 %v1687
    %1826 = vmatprep.subr.bf16.mxu0 %v1690
    %1827 = vmatpush1.bf16.msra.mxu0 %v1689
    %1828 = vmatprep.subr.bf16.mxu0 %v1692
    %1829 = vmatpush1.bf16.msra.mxu0 %v1691
    %1830 = vmatprep.subr.bf16.mxu0 %v1694
    %1831 = vmatpush1.bf16.msra.mxu0 %v1693
    %1832 = vmatprep.subr.bf16.mxu0 %v1696
    %1833 = vmatpush1.bf16.msra.mxu0 %v1695
    %1834 = vmatprep.subr.bf16.mxu0 %v1698
    %1835 = vmatpush1.bf16.msra.mxu0 %v1697
    %1836 = vmatprep.subr.bf16.mxu0 %v1700
    %1837 = vmatpush1.bf16.msra.mxu0 %v1699
    %1838 = vmatprep.subr.bf16.mxu0 %v1702
    %1839 = vmatpush1.bf16.msra.mxu0 %v1701
    %1840 = vmatprep.subr.bf16.mxu0 %v1704
    %1841 = vmatpush1.bf16.msra.mxu0 %v1703
    %1842 = vmatprep.subr.bf16.mxu0 %v1706
    %1843 = vmatpush1.bf16.msra.mxu0 %v1705
    %1844 = vmatprep.subr.bf16.mxu0 %v1708
    %1845 = vmatpush1.bf16.msra.mxu0 %v1707
    %1846 = vmatprep.subr.bf16.mxu0 %v1710
    %1847 = vmatpush1.bf16.msra.mxu0 %v1709
    %1848 = vmatprep.subr.bf16.mxu0 %v1712
    %1849 = vmatpush1.bf16.msra.mxu0 %v1711
    %1850 = vmatprep.subr.bf16.mxu0 %v1714
    %1851 = vmatpush1.bf16.msra.mxu0 %v1713
    %1852 = vmatprep.subr.bf16.mxu0 %v1716
    %1853 = vmatpush1.bf16.msra.mxu0 %v1715
    %1854 = vmatprep.subr.bf16.mxu0 %v1718
    %1855 = vmatpush1.bf16.msra.mxu0 %v1717
    %1856 = vmatprep.mubr.bf16.mxu0 %v906
    %1857 = vmatmul.mubr.bf16.gmra.mrb[0].mxu0 %v905
    %v1858 = vpop.f32.mrb[0].mxu0
    %v1859 = vadd.f32 %v1818, %v1858
    %v1860 = vpop.f32.mrb[0].mxu0
    %v1861 = vadd.f32 %v1820, %v1860
    %v1862 = vpop.f32.mrb[0].mxu0
    %v1863 = vpop.f32.mrb[0].mxu0
    %1864 = vdwg.mxu0
    %v1865 = vmul.f32 %v1859, 1.442695
    %v1866 = vpow.pop %v1865
    %v1867 = vmul.f32 %v1861, 1.442695
    %v1868 = vpow.pop %v1867
    %1869 = vst [vmem:[%s14] sm:$0xff] %v1866
    %1870 = vst [vmem:[%s14 + $0x8] sm:$0xff] %v1868
    // Predicated region
    $region74: #{decoding_cnn_forward.1} parent=1 // pred_check
      _
    $region75: #{decoding_cnn_forward.1} parent=1 // pred_check_branch
      %1872 = sbr.rel (0) target = $region77
    $region76: #{decoding_cnn_forward.1} parent=1 // pred_region
      _
    $region77: #{decoding_cnn_forward.1} parent=1 // pred_fallthru
      _
    // Predicated region
    $region78: #{decoding_cnn_forward.1} parent=1 // pred_check
      _
    $region79: #{decoding_cnn_forward.1} parent=1 // pred_check_branch
      %1874 = sbr.rel (0) target = $region81
    $region80: #{decoding_cnn_forward.1} parent=1 // pred_region
      _
    $region81: #{decoding_cnn_forward.1} parent=1 // pred_fallthru
      _
    // Predicated region
    $region82: #{decoding_cnn_forward.1} parent=1 // pred_check
      _
    $region83: #{decoding_cnn_forward.1} parent=1 // pred_check_branch
      %1876 = sbr.rel (0) target = $region85
    $region84: #{decoding_cnn_forward.1} parent=1 // pred_region
      _
    $region85: #{decoding_cnn_forward.1} parent=1 // pred_fallthru
      _
    // Predicated region
    $region86: #{decoding_cnn_forward.1} parent=1 // pred_check
      _
    $region87: #{decoding_cnn_forward.1} parent=1 // pred_check_branch
      %1878 = sbr.rel (0) target = $region89
    $region88: #{decoding_cnn_forward.1} parent=1 // pred_region
      _
    $region89: #{decoding_cnn_forward.1} parent=1 // pred_fallthru
      _
    %1879 = vsyncpa [#allocation3], 1
    %1880 = vsyncpa [#allocation5], 1
    %1881 = vsyncpa [#allocation8], 1

</llo_original>
